<compile_context>
chip_gen: v7x
topology: tpu7x:2x2x1
jax: 0.10.0
libtpu: 0.0.40
codegen_flags: <defaults>
</compile_context>

<pallas_src>
import functools

import jax
import jax.numpy as jnp
from jax.experimental import pallas as pl
from jax.experimental.pallas import tpu as pltpu

BN_EPS = 1e-5                   # PyTorch BatchNorm1d default eps
FEAT_DIM = 256                  # sizes[0] in BarlowTwins
PROJ_SIZES = (128, 128, 128)    # args.projector = "128-128-128" (lane-dense demo sizes)

MAX_TS = 2048                   # spatial tile (multiple of 128) when H*W is large
SC = 128                        # in-kernel spatial sub-chunk (rows per MXU call)


def _spatial_chunks(ts, sc=SC):
    """Static (start, size) sub-chunks covering one spatial tile."""
    chunks, start = [], 0
    while start < ts:
        size = min(sc, ts - start)
        chunks.append((start, size))
        start += size
    return tuple(chunks)


# ---------------------------------------------------------------------------
# Kernel A: fused 1x1 conv (MXU) + ReLU + global average pool.
# ---------------------------------------------------------------------------
def _backbone_pool_kernel(x_ref, w_ref, o_ref, *, chunks, tile_b):
    # x_ref: (TILE_B, CIN_PAD, TS) bf16   — NCHW-native, spatial on lanes
    # w_ref: (CIN_PAD, FEAT)       bf16   — conv weight pre-scaled by 1/(H*W)
    # o_ref: (TILE_B, FEAT)        f32    — resident pooled accumulator
    @pl.when(pl.program_id(1) == 0)
    def _():
        o_ref[...] = jnp.zeros_like(o_ref)

    w = w_ref[...]
    for b in range(tile_b):                       # static unroll over images
        acc = jnp.zeros((1, o_ref.shape[-1]), jnp.float32)
        for start, size in chunks:                # static spatial sub-chunks
            xs = x_ref[b, :, pl.ds(start, size)]  # (CIN_PAD, size)
            # A^T.B on the MXU: (size, CIN_PAD) @ (CIN_PAD, FEAT) -> (size, FEAT),
            # bf16 operands, f32 accumulation, no materialized transpose.
            h = jax.lax.dot_general(xs, w, (((0,), (0,)), ((), ())),
                                    preferred_element_type=jnp.float32)
            h = jnp.maximum(h, 0.0)                         # ReLU (VPU, f32)
            acc = acc + jnp.sum(h, axis=0, keepdims=True)   # pool partial
        o_ref[pl.ds(b, 1), :] += acc


def backbone_pool(x_nchw, w_conv, *, tile_b=8, max_ts=MAX_TS):
    """Fused synthetic backbone: per-image pooled features, shape (B, FEAT)."""
    b, cin, h, w = x_nchw.shape
    hw = h * w
    feat = w_conv.shape[1]

    # NCHW kept as-is: free reshape to (B, Cin, H*W); spatial stays minor/lane.
    x = x_nchw.reshape(b, cin, hw)

    # Pad Cin up to the sublane granule once (zero channels contribute nothing).
    cin_pad = max(8, ((cin + 7) // 8) * 8)

    # Batch padding (padded rows pool to zero, sliced off afterwards).
    b_pad = pl.cdiv(b, tile_b) * tile_b

    # Spatial tiling: whole image per step when small; otherwise 128-aligned
    # tiles with zero padding (padded pixels conv+ReLU to 0 and add nothing;
    # the 1/HW scale below always uses the true H*W).
    if hw <= max_ts:
        ts, hw_pad = hw, hw
    else:
        ts = max_ts
        hw_pad = pl.cdiv(hw, ts) * ts

    x = jnp.pad(x, ((0, b_pad - b), (0, cin_pad - cin), (0, hw_pad - hw)))
    x = x.astype(jnp.bfloat16)                    # bf16 MXU operand

    # Fold the 1/(H*W) pooling scale into the conv weight (commutes through
    # ReLU and the spatial sum since it is positive).
    wp = (jnp.pad(w_conv, ((0, cin_pad - cin), (0, 0))) * (1.0 / hw)
          ).astype(jnp.bfloat16)

    grid = (b_pad // tile_b, hw_pad // ts)
    kernel = functools.partial(_backbone_pool_kernel,
                               chunks=_spatial_chunks(ts), tile_b=tile_b)
    out = pl.pallas_call(
        kernel,
        out_shape=jax.ShapeDtypeStruct((b_pad, feat), jnp.float32),
        grid=grid,
        in_specs=[
            pl.BlockSpec((tile_b, cin_pad, ts), lambda i, s: (i, 0, s)),
            pl.BlockSpec((cin_pad, feat), lambda i, s: (0, 0)),
        ],
        out_specs=pl.BlockSpec((tile_b, feat), lambda i, s: (i, 0)),
        compiler_params=pltpu.CompilerParams(
            dimension_semantics=("parallel", "arbitrary"),
            vmem_limit_bytes=32 << 20,   # blocks sized well under v7x's 64 MiB/TC
        ),
    )(x, wp)
    return out[:b]


# ---------------------------------------------------------------------------
# Kernel B: projector MLP + BatchNorms + cross-correlation + Barlow loss.
# ---------------------------------------------------------------------------
def _proj_loss_kernel(z_ref, w1_ref, g1_ref, b1_ref, w2_ref, g2_ref, b2_ref,
                      w3_ref, loss_ref, *, n_per_view, inv_batch, lambd):
    n = n_per_view

    def bn(x, gamma=None, beta=None):
        # PyTorch BatchNorm1d (training mode): per-view batch mean, biased var.
        mu = jnp.mean(x, axis=0, keepdims=True)
        var = jnp.mean(jnp.square(x - mu), axis=0, keepdims=True)
        xn = (x - mu) * jax.lax.rsqrt(var + BN_EPS)        # rsqrt -> EUP slot
        if gamma is not None:
            xn = xn * gamma + beta
        return xn

    def mm(x, w_ref_):
        # bf16 MXU operands, f32 accumulation.
        return jnp.dot(x.astype(jnp.bfloat16), w_ref_[...],
                       preferred_element_type=jnp.float32)

    def projector(x):
        h = jnp.maximum(bn(mm(x, w1_ref), g1_ref[...], b1_ref[...]), 0.0)
        h = jnp.maximum(bn(mm(h, w2_ref), g2_ref[...], b2_ref[...]), 0.0)
        return mm(h, w3_ref)

    # Two static per-view slabs (no in-kernel reshape / concat).
    z1 = z_ref[pl.ds(0, n), :]
    z2 = z_ref[pl.ds(n, n), :]
    p1 = bn(projector(z1)) * inv_batch     # fold 1/batch_size into one view
    p2 = bn(projector(z2))                 # final BN, affine=False

    # c = bn(z1).T @ bn(z2): contract over the batch axis (no explicit
    # transpose), f32 on the MXU.
    # TODO(synk): for large per-view N, accumulate c over batch chunks (extra
    # grid axis, v7x megacore); a single dot is fine at demo N.
    c = jax.lax.dot_general(p1, p2, (((0,), (0,)), ((), ())),
                            preferred_element_type=jnp.float32)      # (P, P)
    # TODO(synk): torch.distributed.all_reduce(c) is a multi-device collective;
    # single-device here, so it is a no-op and skipped.

    pdim = c.shape[0]
    row = jax.lax.broadcasted_iota(jnp.int32, (pdim, pdim), 0)
    col = jax.lax.broadcasted_iota(jnp.int32, (pdim, pdim), 1)
    eye = row == col
    on_diag = jnp.sum(jnp.square(jnp.where(eye, c - 1.0, 0.0)))   # sum (c_ii-1)^2
    off_diag = jnp.sum(jnp.square(jnp.where(eye, 0.0, c)))        # sum c_ij^2, i!=j
    loss_ref[0, 0] = on_diag + lambd * off_diag


def barlow_twins_loss(y1, y2, params, *, batch_size, lambd):
    n = y1.shape[0]
    # Both views in one backbone pallas_call (conv weight staged once).
    x_all = jnp.concatenate([y1, y2], axis=0)                  # (2N, Cin, H, W)
    z_all = backbone_pool(x_all, params["w_conv"])              # (2N, 256) f32

    kernel = functools.partial(
        _proj_loss_kernel, n_per_view=n,
        inv_batch=1.0 / float(batch_size), lambd=float(lambd))
    loss = pl.pallas_call(
        kernel,
        out_shape=jax.ShapeDtypeStruct((1, 1), jnp.float32),
        out_specs=pl.BlockSpec(memory_space=pltpu.MemorySpace.SMEM),
    )(z_all,
      params["w1"].astype(jnp.bfloat16), params["g1"], params["b1"],
      params["w2"].astype(jnp.bfloat16), params["g2"], params["b2"],
      params["w3"].astype(jnp.bfloat16))
    return loss[0, 0]


# ---------------------------------------------------------------------------
# Deterministic parameter initialization (synthetic, not a checkpoint load).
# ---------------------------------------------------------------------------
def init_params(key, cin=3):
    sizes = [FEAT_DIM] + list(PROJ_SIZES)        # [256, 128, 128, 128]
    k = jax.random.split(key, 4)
    params = {
        "w_conv": jax.random.normal(k[0], (cin, FEAT_DIM), jnp.float32) * 0.1,
        # Linear(256,128,bias=False), Linear(128,128,bias=False), Linear(128,128,bias=False)
        "w1": jax.random.normal(k[1], (sizes[0], sizes[1]), jnp.float32)
              / jnp.sqrt(jnp.float32(sizes[0])),
        "w2": jax.random.normal(k[2], (sizes[1], sizes[2]), jnp.float32)
              / jnp.sqrt(jnp.float32(sizes[1])),
        "w3": jax.random.normal(k[3], (sizes[2], sizes[3]), jnp.float32)
              / jnp.sqrt(jnp.float32(sizes[2])),
        # BatchNorm1d affine params (PyTorch default init: weight=1, bias=0)
        "g1": jnp.ones((1, sizes[1]), jnp.float32),
        "b1": jnp.zeros((1, sizes[1]), jnp.float32),
        "g2": jnp.ones((1, sizes[2]), jnp.float32),
        "b2": jnp.zeros((1, sizes[2]), jnp.float32),
    }
    return params


if __name__ == "__main__":
    key = jax.random.PRNGKey(0)
    k_y1, k_y2, k_params = jax.random.split(key, 3)

    batch, cin, spatial = 8, 3, 8                 # y1, y2: (8, 3, 8, 8), NCHW
    y1 = jax.random.normal(k_y1, (batch, cin, spatial, spatial), jnp.float32)
    y2 = jax.random.normal(k_y2, (batch, cin, spatial, spatial), jnp.float32)
    params = init_params(k_params, cin=cin)

    loss = barlow_twins_loss(y1, y2, params, batch_size=batch, lambd=0.0051)
    jax.block_until_ready(loss)
    assert jnp.isfinite(loss)
    print("KERNEL_OK")
</pallas_src>

<mosaic_0001>
module attributes {stable_mosaic.version = 11 : i64} {
  func.func @_backbone_pool_kernel(%arg0: i32, %arg1: i32, %arg2: memref<8x8x64xbf16, #tpu.memory_space<vmem>>, %arg3: memref<8x256xbf16, #tpu.memory_space<vmem>>, %arg4: memref<8x256xf32, #tpu.memory_space<vmem>>) attributes {dimension_semantics = [#tpu.dimension_semantics<parallel>, #tpu.dimension_semantics<arbitrary>], iteration_bounds = array<i64: 2, 1>, scalar_prefetch = 0 : i64, scratch_operands = 0 : i64, tpu.core_type = #tpu.core_type<tc>, window_params = [{transform_indices = @transform_0, window_bounds = array<i64: 8, 8, 64>}, {pipeline_mode = #tpu.pipeline_mode<synchronous>, transform_indices = @transform_1, window_bounds = array<i64: 8, 256>}, {transform_indices = @transform_2, window_bounds = array<i64: 8, 256>}]} {
    %c0_i32 = arith.constant 0 : i32
    %0 = arith.cmpi eq, %arg1, %c0_i32 : i32
    %1 = arith.extui %0 : i1 to i32
    %c0_i32_0 = arith.constant 0 : i32
    %2 = arith.cmpi ne, %1, %c0_i32_0 : i32
    scf.if %2 {
      %cst_82 = arith.constant 0.000000e+00 : f32
      %100 = vector.broadcast %cst_82 : f32 to vector<8x256xf32>
      %c0_83 = arith.constant 0 : index
      %c0_84 = arith.constant 0 : index
      %101 = vector.load %arg4[%c0_83, %c0_84] : memref<8x256xf32, #tpu.memory_space<vmem>>, vector<8x256xf32>
      tpu.vector_store %arg4[%c0_83, %c0_84], %100 {strides = array<i32>} : memref<8x256xf32, #tpu.memory_space<vmem>>, vector<8x256xf32>,
    } else {
    }
    %c0 = arith.constant 0 : index
    %c0_1 = arith.constant 0 : index
    %3 = vector.load %arg3[%c0, %c0_1] : memref<8x256xbf16, #tpu.memory_space<vmem>>, vector<8x256xbf16>
    %cst = arith.constant 0.000000e+00 : f32
    %4 = vector.broadcast %cst : f32 to vector<1x256xf32>
    %c0_2 = arith.constant 0 : index
    %c0_3 = arith.constant 0 : index
    %c0_4 = arith.constant 0 : index
    %5 = vector.load %arg2[%c0_2, %c0_3, %c0_4] : memref<8x8x64xbf16, #tpu.memory_space<vmem>>, vector<1x8x64xbf16>
    %6 = vector.shape_cast %5 : vector<1x8x64xbf16> to vector<8x64xbf16>
    %cst_5 = arith.constant dense<0.000000e+00> : vector<64x256xf32>
    %7 = tpu.matmul %6, %3, %cst_5 {dimension_numbers = #tpu.dot_dimension_numbers<[0], [0], [1], [1], [0, 1, 1, 1], [], []>} : vector<8x64xbf16>, vector<8x256xbf16>, vector<64x256xf32> -> vector<64x256xf32>
    %cst_6 = arith.constant 0.000000e+00 : f32
    %8 = vector.broadcast %cst_6 : f32 to vector<64x256xf32>
    %9 = arith.maximumf %7, %8 : vector<64x256xf32>
    %cst_7 = arith.constant dense<0.000000e+00> : vector<256xf32>
    %10 = vector.multi_reduction <add>, %9, %cst_7 [0] : vector<64x256xf32> to vector<256xf32>
    %11 = vector.shape_cast %10 : vector<256xf32> to vector<1x256xf32>
    %12 = arith.addf %4, %11 : vector<1x256xf32>
    %c0_8 = arith.constant 0 : index
    %c0_9 = arith.constant 0 : index
    %13 = vector.load %arg4[%c0_8, %c0_9] : memref<8x256xf32, #tpu.memory_space<vmem>>, vector<1x256xf32>
    %14 = arith.addf %13, %12 : vector<1x256xf32>
    %c0_10 = arith.constant 0 : index
    %c0_11 = arith.constant 0 : index
    %15 = vector.load %arg4[%c0_10, %c0_11] : memref<8x256xf32, #tpu.memory_space<vmem>>, vector<1x256xf32>
    tpu.vector_store %arg4[%c0_10, %c0_11], %14 {strides = array<i32>} : memref<8x256xf32, #tpu.memory_space<vmem>>, vector<1x256xf32>,
    %cst_12 = arith.constant 0.000000e+00 : f32
    %16 = vector.broadcast %cst_12 : f32 to vector<1x256xf32>
    %c1 = arith.constant 1 : index
    %c0_13 = arith.constant 0 : index
    %c0_14 = arith.constant 0 : index
    %17 = vector.load %arg2[%c1, %c0_13, %c0_14] : memref<8x8x64xbf16, #tpu.memory_space<vmem>>, vector<1x8x64xbf16>
    %18 = vector.shape_cast %17 : vector<1x8x64xbf16> to vector<8x64xbf16>
    %cst_15 = arith.constant dense<0.000000e+00> : vector<64x256xf32>
    %19 = tpu.matmul %18, %3, %cst_15 {dimension_numbers = #tpu.dot_dimension_numbers<[0], [0], [1], [1], [0, 1, 1, 1], [], []>} : vector<8x64xbf16>, vector<8x256xbf16>, vector<64x256xf32> -> vector<64x256xf32>
    %cst_16 = arith.constant 0.000000e+00 : f32
    %20 = vector.broadcast %cst_16 : f32 to vector<64x256xf32>
    %21 = arith.maximumf %19, %20 : vector<64x256xf32>
    %cst_17 = arith.constant dense<0.000000e+00> : vector<256xf32>
    %22 = vector.multi_reduction <add>, %21, %cst_17 [0] : vector<64x256xf32> to vector<256xf32>
    %23 = vector.shape_cast %22 : vector<256xf32> to vector<1x256xf32>
    %24 = arith.addf %16, %23 : vector<1x256xf32>
    %c1_18 = arith.constant 1 : index
    %c0_19 = arith.constant 0 : index
    %25 = vector.load %arg4[%c1_18, %c0_19] : memref<8x256xf32, #tpu.memory_space<vmem>>, vector<1x256xf32>
    %26 = arith.addf %25, %24 : vector<1x256xf32>
    %c1_20 = arith.constant 1 : index
    %c0_21 = arith.constant 0 : index
    %27 = vector.load %arg4[%c1_20, %c0_21] : memref<8x256xf32, #tpu.memory_space<vmem>>, vector<1x256xf32>
    tpu.vector_store %arg4[%c1_20, %c0_21], %26 {strides = array<i32>} : memref<8x256xf32, #tpu.memory_space<vmem>>, vector<1x256xf32>,
    %cst_22 = arith.constant 0.000000e+00 : f32
    %28 = vector.broadcast %cst_22 : f32 to vector<1x256xf32>
    %c2 = arith.constant 2 : index
    %c0_23 = arith.constant 0 : index
    %c0_24 = arith.constant 0 : index
    %29 = vector.load %arg2[%c2, %c0_23, %c0_24] : memref<8x8x64xbf16, #tpu.memory_space<vmem>>, vector<1x8x64xbf16>
    %30 = vector.shape_cast %29 : vector<1x8x64xbf16> to vector<8x64xbf16>
    %cst_25 = arith.constant dense<0.000000e+00> : vector<64x256xf32>
    %31 = tpu.matmul %30, %3, %cst_25 {dimension_numbers = #tpu.dot_dimension_numbers<[0], [0], [1], [1], [0, 1, 1, 1], [], []>} : vector<8x64xbf16>, vector<8x256xbf16>, vector<64x256xf32> -> vector<64x256xf32>
    %cst_26 = arith.constant 0.000000e+00 : f32
    %32 = vector.broadcast %cst_26 : f32 to vector<64x256xf32>
    %33 = arith.maximumf %31, %32 : vector<64x256xf32>
    %cst_27 = arith.constant dense<0.000000e+00> : vector<256xf32>
    %34 = vector.multi_reduction <add>, %33, %cst_27 [0] : vector<64x256xf32> to vector<256xf32>
    %35 = vector.shape_cast %34 : vector<256xf32> to vector<1x256xf32>
    %36 = arith.addf %28, %35 : vector<1x256xf32>
    %c2_28 = arith.constant 2 : index
    %c0_29 = arith.constant 0 : index
    %37 = vector.load %arg4[%c2_28, %c0_29] : memref<8x256xf32, #tpu.memory_space<vmem>>, vector<1x256xf32>
    %38 = arith.addf %37, %36 : vector<1x256xf32>
    %c2_30 = arith.constant 2 : index
    %c0_31 = arith.constant 0 : index
    %39 = vector.load %arg4[%c2_30, %c0_31] : memref<8x256xf32, #tpu.memory_space<vmem>>, vector<1x256xf32>
    tpu.vector_store %arg4[%c2_30, %c0_31], %38 {strides = array<i32>} : memref<8x256xf32, #tpu.memory_space<vmem>>, vector<1x256xf32>,
    %cst_32 = arith.constant 0.000000e+00 : f32
    %40 = vector.broadcast %cst_32 : f32 to vector<1x256xf32>
    %c3 = arith.constant 3 : index
    %c0_33 = arith.constant 0 : index
    %c0_34 = arith.constant 0 : index
    %41 = vector.load %arg2[%c3, %c0_33, %c0_34] : memref<8x8x64xbf16, #tpu.memory_space<vmem>>, vector<1x8x64xbf16>
    %42 = vector.shape_cast %41 : vector<1x8x64xbf16> to vector<8x64xbf16>
    %cst_35 = arith.constant dense<0.000000e+00> : vector<64x256xf32>
    %43 = tpu.matmul %42, %3, %cst_35 {dimension_numbers = #tpu.dot_dimension_numbers<[0], [0], [1], [1], [0, 1, 1, 1], [], []>} : vector<8x64xbf16>, vector<8x256xbf16>, vector<64x256xf32> -> vector<64x256xf32>
    %cst_36 = arith.constant 0.000000e+00 : f32
    %44 = vector.broadcast %cst_36 : f32 to vector<64x256xf32>
    %45 = arith.maximumf %43, %44 : vector<64x256xf32>
    %cst_37 = arith.constant dense<0.000000e+00> : vector<256xf32>
    %46 = vector.multi_reduction <add>, %45, %cst_37 [0] : vector<64x256xf32> to vector<256xf32>
    %47 = vector.shape_cast %46 : vector<256xf32> to vector<1x256xf32>
    %48 = arith.addf %40, %47 : vector<1x256xf32>
    %c3_38 = arith.constant 3 : index
    %c0_39 = arith.constant 0 : index
    %49 = vector.load %arg4[%c3_38, %c0_39] : memref<8x256xf32, #tpu.memory_space<vmem>>, vector<1x256xf32>
    %50 = arith.addf %49, %48 : vector<1x256xf32>
    %c3_40 = arith.constant 3 : index
    %c0_41 = arith.constant 0 : index
    %51 = vector.load %arg4[%c3_40, %c0_41] : memref<8x256xf32, #tpu.memory_space<vmem>>, vector<1x256xf32>
    tpu.vector_store %arg4[%c3_40, %c0_41], %50 {strides = array<i32>} : memref<8x256xf32, #tpu.memory_space<vmem>>, vector<1x256xf32>,
    %cst_42 = arith.constant 0.000000e+00 : f32
    %52 = vector.broadcast %cst_42 : f32 to vector<1x256xf32>
    %c4 = arith.constant 4 : index
    %c0_43 = arith.constant 0 : index
    %c0_44 = arith.constant 0 : index
    %53 = vector.load %arg2[%c4, %c0_43, %c0_44] : memref<8x8x64xbf16, #tpu.memory_space<vmem>>, vector<1x8x64xbf16>
    %54 = vector.shape_cast %53 : vector<1x8x64xbf16> to vector<8x64xbf16>
    %cst_45 = arith.constant dense<0.000000e+00> : vector<64x256xf32>
    %55 = tpu.matmul %54, %3, %cst_45 {dimension_numbers = #tpu.dot_dimension_numbers<[0], [0], [1], [1], [0, 1, 1, 1], [], []>} : vector<8x64xbf16>, vector<8x256xbf16>, vector<64x256xf32> -> vector<64x256xf32>
    %cst_46 = arith.constant 0.000000e+00 : f32
    %56 = vector.broadcast %cst_46 : f32 to vector<64x256xf32>
    %57 = arith.maximumf %55, %56 : vector<64x256xf32>
    %cst_47 = arith.constant dense<0.000000e+00> : vector<256xf32>
    %58 = vector.multi_reduction <add>, %57, %cst_47 [0] : vector<64x256xf32> to vector<256xf32>
    %59 = vector.shape_cast %58 : vector<256xf32> to vector<1x256xf32>
    %60 = arith.addf %52, %59 : vector<1x256xf32>
    %c4_48 = arith.constant 4 : index
    %c0_49 = arith.constant 0 : index
    %61 = vector.load %arg4[%c4_48, %c0_49] : memref<8x256xf32, #tpu.memory_space<vmem>>, vector<1x256xf32>
    %62 = arith.addf %61, %60 : vector<1x256xf32>
    %c4_50 = arith.constant 4 : index
    %c0_51 = arith.constant 0 : index
    %63 = vector.load %arg4[%c4_50, %c0_51] : memref<8x256xf32, #tpu.memory_space<vmem>>, vector<1x256xf32>
    tpu.vector_store %arg4[%c4_50, %c0_51], %62 {strides = array<i32>} : memref<8x256xf32, #tpu.memory_space<vmem>>, vector<1x256xf32>,
    %cst_52 = arith.constant 0.000000e+00 : f32
    %64 = vector.broadcast %cst_52 : f32 to vector<1x256xf32>
    %c5 = arith.constant 5 : index
    %c0_53 = arith.constant 0 : index
    %c0_54 = arith.constant 0 : index
    %65 = vector.load %arg2[%c5, %c0_53, %c0_54] : memref<8x8x64xbf16, #tpu.memory_space<vmem>>, vector<1x8x64xbf16>
    %66 = vector.shape_cast %65 : vector<1x8x64xbf16> to vector<8x64xbf16>
    %cst_55 = arith.constant dense<0.000000e+00> : vector<64x256xf32>
    %67 = tpu.matmul %66, %3, %cst_55 {dimension_numbers = #tpu.dot_dimension_numbers<[0], [0], [1], [1], [0, 1, 1, 1], [], []>} : vector<8x64xbf16>, vector<8x256xbf16>, vector<64x256xf32> -> vector<64x256xf32>
    %cst_56 = arith.constant 0.000000e+00 : f32
    %68 = vector.broadcast %cst_56 : f32 to vector<64x256xf32>
    %69 = arith.maximumf %67, %68 : vector<64x256xf32>
    %cst_57 = arith.constant dense<0.000000e+00> : vector<256xf32>
    %70 = vector.multi_reduction <add>, %69, %cst_57 [0] : vector<64x256xf32> to vector<256xf32>
    %71 = vector.shape_cast %70 : vector<256xf32> to vector<1x256xf32>
    %72 = arith.addf %64, %71 : vector<1x256xf32>
    %c5_58 = arith.constant 5 : index
    %c0_59 = arith.constant 0 : index
    %73 = vector.load %arg4[%c5_58, %c0_59] : memref<8x256xf32, #tpu.memory_space<vmem>>, vector<1x256xf32>
    %74 = arith.addf %73, %72 : vector<1x256xf32>
    %c5_60 = arith.constant 5 : index
    %c0_61 = arith.constant 0 : index
    %75 = vector.load %arg4[%c5_60, %c0_61] : memref<8x256xf32, #tpu.memory_space<vmem>>, vector<1x256xf32>
    tpu.vector_store %arg4[%c5_60, %c0_61], %74 {strides = array<i32>} : memref<8x256xf32, #tpu.memory_space<vmem>>, vector<1x256xf32>,
    %cst_62 = arith.constant 0.000000e+00 : f32
    %76 = vector.broadcast %cst_62 : f32 to vector<1x256xf32>
    %c6 = arith.constant 6 : index
    %c0_63 = arith.constant 0 : index
    %c0_64 = arith.constant 0 : index
    %77 = vector.load %arg2[%c6, %c0_63, %c0_64] : memref<8x8x64xbf16, #tpu.memory_space<vmem>>, vector<1x8x64xbf16>
    %78 = vector.shape_cast %77 : vector<1x8x64xbf16> to vector<8x64xbf16>
    %cst_65 = arith.constant dense<0.000000e+00> : vector<64x256xf32>
    %79 = tpu.matmul %78, %3, %cst_65 {dimension_numbers = #tpu.dot_dimension_numbers<[0], [0], [1], [1], [0, 1, 1, 1], [], []>} : vector<8x64xbf16>, vector<8x256xbf16>, vector<64x256xf32> -> vector<64x256xf32>
    %cst_66 = arith.constant 0.000000e+00 : f32
    %80 = vector.broadcast %cst_66 : f32 to vector<64x256xf32>
    %81 = arith.maximumf %79, %80 : vector<64x256xf32>
    %cst_67 = arith.constant dense<0.000000e+00> : vector<256xf32>
    %82 = vector.multi_reduction <add>, %81, %cst_67 [0] : vector<64x256xf32> to vector<256xf32>
    %83 = vector.shape_cast %82 : vector<256xf32> to vector<1x256xf32>
    %84 = arith.addf %76, %83 : vector<1x256xf32>
    %c6_68 = arith.constant 6 : index
    %c0_69 = arith.constant 0 : index
    %85 = vector.load %arg4[%c6_68, %c0_69] : memref<8x256xf32, #tpu.memory_space<vmem>>, vector<1x256xf32>
    %86 = arith.addf %85, %84 : vector<1x256xf32>
    %c6_70 = arith.constant 6 : index
    %c0_71 = arith.constant 0 : index
    %87 = vector.load %arg4[%c6_70, %c0_71] : memref<8x256xf32, #tpu.memory_space<vmem>>, vector<1x256xf32>
    tpu.vector_store %arg4[%c6_70, %c0_71], %86 {strides = array<i32>} : memref<8x256xf32, #tpu.memory_space<vmem>>, vector<1x256xf32>,
    %cst_72 = arith.constant 0.000000e+00 : f32
    %88 = vector.broadcast %cst_72 : f32 to vector<1x256xf32>
    %c7 = arith.constant 7 : index
    %c0_73 = arith.constant 0 : index
    %c0_74 = arith.constant 0 : index
    %89 = vector.load %arg2[%c7, %c0_73, %c0_74] : memref<8x8x64xbf16, #tpu.memory_space<vmem>>, vector<1x8x64xbf16>
    %90 = vector.shape_cast %89 : vector<1x8x64xbf16> to vector<8x64xbf16>
    %cst_75 = arith.constant dense<0.000000e+00> : vector<64x256xf32>
    %91 = tpu.matmul %90, %3, %cst_75 {dimension_numbers = #tpu.dot_dimension_numbers<[0], [0], [1], [1], [0, 1, 1, 1], [], []>} : vector<8x64xbf16>, vector<8x256xbf16>, vector<64x256xf32> -> vector<64x256xf32>
    %cst_76 = arith.constant 0.000000e+00 : f32
    %92 = vector.broadcast %cst_76 : f32 to vector<64x256xf32>
    %93 = arith.maximumf %91, %92 : vector<64x256xf32>
    %cst_77 = arith.constant dense<0.000000e+00> : vector<256xf32>
    %94 = vector.multi_reduction <add>, %93, %cst_77 [0] : vector<64x256xf32> to vector<256xf32>
    %95 = vector.shape_cast %94 : vector<256xf32> to vector<1x256xf32>
    %96 = arith.addf %88, %95 : vector<1x256xf32>
    %c7_78 = arith.constant 7 : index
    %c0_79 = arith.constant 0 : index
    %97 = vector.load %arg4[%c7_78, %c0_79] : memref<8x256xf32, #tpu.memory_space<vmem>>, vector<1x256xf32>
    %98 = arith.addf %97, %96 : vector<1x256xf32>
    %c7_80 = arith.constant 7 : index
    %c0_81 = arith.constant 0 : index
    %99 = vector.load %arg4[%c7_80, %c0_81] : memref<8x256xf32, #tpu.memory_space<vmem>>, vector<1x256xf32>
    tpu.vector_store %arg4[%c7_80, %c0_81], %98 {strides = array<i32>} : memref<8x256xf32, #tpu.memory_space<vmem>>, vector<1x256xf32>,
    return
  }
  func.func @transform_0(%arg0: i32, %arg1: i32) -> (i32, i32, i32) {
    %c0_i32 = arith.constant 0 : i32
    %c0_i32_0 = arith.constant 0 : i32
    return %arg0, %c0_i32, %arg1 : i32, i32, i32
  }
  func.func @transform_1(%arg0: i32, %arg1: i32) -> (i32, i32) {
    %c0_i32 = arith.constant 0 : i32
    %c0_i32_0 = arith.constant 0 : i32
    %c0_i32_1 = arith.constant 0 : i32
    return %c0_i32, %c0_i32_0 : i32, i32
  }
  func.func @transform_2(%arg0: i32, %arg1: i32) -> (i32, i32) {
    %c0_i32 = arith.constant 0 : i32
    %c0_i32_0 = arith.constant 0 : i32
    return %arg0, %c0_i32 : i32, i32
  }
}

</mosaic_0001>

<llo_original>
// kernel: tpu_custom_call.1
$region0: #{tpu_custom_call.1}
  #allocation0 [shape = 'u32[]', space=smem, size = 0x4, offset = 0x4, fixed_abs, tag = 'smem constant byte address 0x4 - core index']
  #allocation1 [shape = 'u32[144,128]{1,0:T(1,128)}', space=vmem, size = 0x12000, scoped, tag = 'internal scratch']
  %s0 = inlined_call_operand.hbm [shape: bf16[16,8,64], index: 0, kind: input, shape index: {}]
  %s1 = inlined_call_operand.hbm [shape: bf16[8,256], index: 1, kind: input, shape index: {}]
  %s2 = inlined_call_operand.hbm [shape: f32[16,256], index: 2, kind: output, shape index: {}]
  %s3 = sld [smem:[#allocation0]]
  $region53: #{tpu_custom_call.1} parent=0
    _
  %s5 = ssub.s32 1, %s3
  %s6 = scalar_select 0, %s5, %s3
  $region1: #{tpu_custom_call.1} parent=0
    #allocation2 [shape = 'u8[32768]{0}', space=vmem, size = 0x8000, scoped, tag = 'input window, operand 0']
    #allocation3 [shape = 's32[2]{0}', space=sflag, size = 0x8, scoped, tag = 'scoped memory for tpu_custom_call.1']
    #allocation4 [shape = 's32[2]{0}', space=sflag, size = 0x8, scoped, tag = 'scoped memory for tpu_custom_call.1']
    #allocation5 [shape = 'u8[4096]{0}', space=vmem, size = 0x1000, scoped, tag = 'input window, operand 1, single buffered']
    #allocation6 [shape = 's32[1]{0}', space=sflag, size = 0x4, scoped, tag = 'scoped memory for tpu_custom_call.1']
    #allocation7 [shape = 'u8[16384]{0}', space=vmem, size = 0x4000, scoped, tag = 'output window, operand 0']
    %7 = vsyncpa [#allocation3], 0
    %s8 = scalar_lea.sflag [#allocation3], 1
    %9 = vsyncpa %s8, 0
    %10 = vsyncpa [#allocation6], 0
    %11 = vsyncpa [#allocation4], 0
    %s12 = scalar_lea.sflag [#allocation4], 1
    %13 = vsyncpa %s12, 0
    loop: start=0, step=1, limit=4
    $region2: #{tpu_custom_call.1} parent=1 // loop_pre_header
      _
    $region3: #{tpu_custom_call.1} parent=1 // loop_header
      %s15 = sphi 0, %s19
      %p16 = scmp.ge.s32.totalorder %s15, 4
      %s22 = sphi 0, %s34
      %s23 = sphi 0, %s30
      %s24 = sphi 0, %s22
      %s25 = sphi 0, %s23
      %s26 = sphi 0, %s24
      %s27 = sphi 0, %s25
      %s39 = sphi 0, %s41
      %s42 = sphi 0, %s39
      %s43 = sphi 0, %s42
      %s59 = sphi 0, %s43
      %s63 = sphi 0, %s63
      %s65 = sphi 0, %s63
      %s66 = sphi 0, %s65
      %s80 = sphi 0, %s66
      %s86 = sphi 0, %s88
      %s89 = sphi 0, %s86
      %s90 = sphi 0, %s89
      %s106 = sphi 0, %s90
    $region4: #{tpu_custom_call.1} parent=1 // loop_header_branch
      %18 = sbr.rel (%p16) target = $region8
    $region5: #{tpu_custom_call.1} parent=1 // loop_body
      %s20 = ssub.s32 %s15, 1
      %s21 = ssub.s32 %s15, 2
      %s28 = sadd.s32 1, %s23
      %p29 = scmp.ge.s32.totalorder %s28, 1
      %s30 = scalar_select %p29, 0, %s28
      %s31 = sadd.s32 1, %s22
      %s32 = scalar_select %p29, %s31, %s22
      %p33 = scmp.ge.s32.totalorder %s32, 2
      %s34 = scalar_select %p33, 0, %s32
      %s35 = ssub.s32 %s22, %s34
      %s36 = ssub.s32 %s23, %s30
      %s37 = sor.u32 %s35, %s36
      %p38 = scmp.eq.s32.totalorder %s37, 0
      %s40 = sadd.s32 %s39, 1
      %s41 = scalar_select %p38, %s39, %s40
      %p44 = pneg %p38
      %p45 = scmp.eq.s32.totalorder %s15, 1
      %p46 = por %p44, %p45
      %p47 = scmp.ne.s32.totalorder %s39, %s42
      %p48 = scmp.eq.s32.totalorder %s15, 0
      %p49 = por %p47, %p48
      %p50 = scmp.ne.s32.totalorder %s39, %s42
      %p51 = scmp.eq.s32.totalorder %s20, 1
      %p52 = por %p50, %p51
      %p53 = scmp.ne.s32.totalorder %s42, %s43
      %p54 = scmp.eq.s32.totalorder %s20, 0
      %p55 = por %p53, %p54
      %p56 = scmp.ne.s32.totalorder %s42, %s43
      %p57 = scmp.eq.s32.totalorder %s21, 1
      %p58 = por %p56, %p57
      %p60 = scmp.ne.s32.totalorder %s43, %s59
      %p61 = scmp.eq.s32.totalorder %s21, 0
      %p62 = por %p60, %p61
      %s64 = sadd.s32 %s63, 1
      %p67 = scmp.eq.s32.totalorder %s15, 1
      %p68 = scmp.ne.s32.totalorder %s63, %s65
      %p69 = scmp.eq.s32.totalorder %s15, 0
      %p70 = por %p68, %p69
      %p71 = scmp.ne.s32.totalorder %s63, %s65
      %p72 = scmp.eq.s32.totalorder %s20, 1
      %p73 = por %p71, %p72
      %p74 = scmp.ne.s32.totalorder %s65, %s66
      %p75 = scmp.eq.s32.totalorder %s20, 0
      %p76 = por %p74, %p75
      %p77 = scmp.ne.s32.totalorder %s65, %s66
      %p78 = scmp.eq.s32.totalorder %s21, 1
      %p79 = por %p77, %p78
      %p81 = scmp.ne.s32.totalorder %s66, %s80
      %p82 = scmp.eq.s32.totalorder %s21, 0
      %p83 = por %p81, %p82
      %s84 = ssub.s32 %s22, %s34
      %p85 = scmp.eq.s32.totalorder %s84, 0
      %s87 = sadd.s32 %s86, 1
      %s88 = scalar_select %p85, %s86, %s87
      %p91 = pneg %p85
      %p92 = scmp.eq.s32.totalorder %s15, 1
      %p93 = por %p91, %p92
      %p94 = scmp.ne.s32.totalorder %s86, %s89
      %p95 = scmp.eq.s32.totalorder %s15, 0
      %p96 = por %p94, %p95
      %p97 = scmp.ne.s32.totalorder %s86, %s89
      %p98 = scmp.eq.s32.totalorder %s20, 1
      %p99 = por %p97, %p98
      %p100 = scmp.ne.s32.totalorder %s89, %s90
      %p101 = scmp.eq.s32.totalorder %s20, 0
      %p102 = por %p100, %p101
      %p103 = scmp.ne.s32.totalorder %s89, %s90
      %p104 = scmp.eq.s32.totalorder %s21, 1
      %p105 = por %p103, %p104
      %p107 = scmp.ne.s32.totalorder %s90, %s106
      %p108 = scmp.eq.s32.totalorder %s21, 0
      %p109 = por %p107, %p108
      %p110 = scmp.le.s32.totalorder 1, %s15
      %p111 = scmp.lt.s32.totalorder %s15, 3
      %p112 = pnand %p110, %p111
      %p113 = pneg %p112
      // Predicated region
      $region9: #{tpu_custom_call.1} parent=5 // pred_check
        _
      $region10: #{tpu_custom_call.1} parent=5 // pred_check_branch
        %115 = sbr.rel (%p112) target = $region12
      $region11: #{tpu_custom_call.1} parent=5 // pred_region
        %s116 = ssub.s32 %s15, 1
        // Predicated region
        $region13: #{tpu_custom_call.1} parent=11 // pred_check
          %p117 = pneg %p76
        $region14: #{tpu_custom_call.1} parent=11 // pred_check_branch
          %119 = sbr.rel (%p117) target = $region16
        $region15: #{tpu_custom_call.1} parent=11 // pred_region
          %s121 = ssub.s32 128, 128
          %122 = vsyncadd [#allocation6], %s121
          %s124 = sshll.u32 [#allocation5], 4
          %s125 = int_to_ptr.vmem [resolvable:$true] %s124
          %127 = dma.hbm_to_vmem [thread:$0]  %s1, 128, %s125, [#allocation6]
        $region16: #{tpu_custom_call.1} parent=11 // pred_fallthru
          _
      $region12: #{tpu_custom_call.1} parent=5 // pred_fallthru
        _
      %p128 = scmp.lt.s32.totalorder %s15, 2
      // Predicated region
      $region17: #{tpu_custom_call.1} parent=5 // pred_check
        %p129 = pneg %p128
      $region18: #{tpu_custom_call.1} parent=5 // pred_check_branch
        %131 = sbr.rel (%p129) target = $region20
      $region19: #{tpu_custom_call.1} parent=5 // pred_region
        // Predicated region
        $region21: #{tpu_custom_call.1} parent=19 // pred_check
          %p132 = pneg %p49
        $region22: #{tpu_custom_call.1} parent=19 // pred_check_branch
          %134 = sbr.rel (%p132) target = $region24
        $region23: #{tpu_custom_call.1} parent=19 // pred_region
          %s135 = sand.u32 %s39, 1
          %s136 = scalar_lea.sflag [#allocation3], %s135
          %s137 = sand.u32 %s39, 1
          %s138 = smul.addr %s137, 32
          %s139 = scalar_lea.vmem [#allocation2], %s138
          %s140 = smul.u32 8, %s22
          %s142 = ssub.s32 512, 512
          %143 = vsyncadd %s136, %s142
          %s144 = sadd.s32 %s23, %s140
          %s145 = smul.addr %s144, 64
          %s146 = scalar_lea.hbm %s0, %s145
          %s147 = sshll.u32 %s139, 4
          %s148 = int_to_ptr.vmem [resolvable:$true] %s147
          %153 = dma.hbm_to_vmem [thread:$0]  %s146, 512, %s148, %s136, 64, 64, 4
        $region24: #{tpu_custom_call.1} parent=19 // pred_fallthru
          _
      $region20: #{tpu_custom_call.1} parent=5 // pred_fallthru
        _
      %p154 = scmp.le.s32.totalorder 1, %s15
      %p155 = scmp.lt.s32.totalorder %s15, 3
      %p156 = pnand %p154, %p155
      %p157 = pneg %p156
      // Predicated region
      $region25: #{tpu_custom_call.1} parent=5 // pred_check
        _
      $region26: #{tpu_custom_call.1} parent=5 // pred_check_branch
        %159 = sbr.rel (%p156) target = $region28
      $region27: #{tpu_custom_call.1} parent=5 // pred_region
        %s160 = ssub.s32 %s15, 1
        %s161 = sand.u32 %s42, 1
        %s162 = scalar_lea.sflag [#allocation3], %s161
        %s163 = sand.u32 %s42, 1
        %s164 = smul.addr %s163, 32
        %s165 = scalar_lea.vmem [#allocation2], %s164
        // Predicated region
        $region29: #{tpu_custom_call.1} parent=27 // pred_check
          %p166 = pneg %p55
        $region30: #{tpu_custom_call.1} parent=27 // pred_check_branch
          %168 = sbr.rel (%p166) target = $region32
        $region31: #{tpu_custom_call.1} parent=27 // pred_region
          %169 = dma.done %s162, 512
        $region32: #{tpu_custom_call.1} parent=27 // pred_fallthru
          _
        // Predicated region
        $region33: #{tpu_custom_call.1} parent=27 // pred_check
          %p170 = pneg %p76
        $region34: #{tpu_custom_call.1} parent=27 // pred_check_branch
          %172 = sbr.rel (%p170) target = $region36
        $region35: #{tpu_custom_call.1} parent=27 // pred_region
          %173 = dma.done [#allocation6], 128
        $region36: #{tpu_custom_call.1} parent=27 // pred_fallthru
          _
        %s174 = sand.u32 %s42, 1
        %s175 = scalar_lea.sflag [#allocation3], %s174
        %s176 = sand.u32 %s42, 1
        %s177 = smul.addr %s176, 32
        %s178 = scalar_lea.vmem [#allocation2], %s177
        %p179 = pneg %p55
        %p180 = pneg %p52
        %p181 = pneg %p76
        %p182 = pneg %p73
        %p183 = pneg %p102
        %p184 = pneg %p99
        %s185 = sand.u32 %s89, 1
        %s186 = scalar_lea.sflag [#allocation4], %s185
        %s187 = sand.u32 %s89, 1
        %s188 = smul.addr %s187, 16
        %s189 = scalar_lea.vmem [#allocation7], %s188
        %s190 = smul.u32 8, %s24
        %p192 = scmp.eq.s32.totalorder %s25, 0
        // Predicated region
        $region37: #{tpu_custom_call.1} parent=27 // pred_check
          %p193 = pneg %p192
        $region38: #{tpu_custom_call.1} parent=27 // pred_check_branch
          %195 = sbr.rel (%p193) target = $region40
        $region39: #{tpu_custom_call.1} parent=27 // pred_region
          %196 = vst [vmem:[%s189] sm:$0xff] 0.0
          %197 = vst [vmem:[%s189 + $0x8] sm:$0xff] 0.0
        $region40: #{tpu_custom_call.1} parent=27 // pred_fallthru
          _
        %v198 = vld [vmem:[#allocation5] sm:$0xff]
        %v199 = vld [vmem:[%s165] sm:$0xf]
        %200 = vxpose.xlu0.c.b16.start [1/8] %v199, 128
        %201 = vxpose.xlu0.c.b16.cont [2/8] 0, 128
        %202 = vxpose.xlu0.c.b16.cont [3/8] 0, 128
        %203 = vxpose.xlu0.c.b16.cont [4/8] 0, 128
        %204 = vxpose.xlu0.c.b16.cont [5/8] 0, 128
        %205 = vxpose.xlu0.c.b16.cont [6/8] 0, 128
        %206 = vxpose.xlu0.c.b16.cont [7/8] 0, 128
        %207 = vxpose.xlu0.c.b16.end [8/8] 0, 128
        %v208 = vpop.trf.xlu0
        %v209 = vpop.trf.xlu0
        %v210 = vpop.trf.xlu0
        %v211 = vpop.trf.xlu0
        %v212 = vpop.trf.xlu0
        %v213 = vpop.trf.xlu0
        %v214 = vpop.trf.xlu0
        %v215 = vpop.trf.xlu0
        %v217 = vunpack.c.l.b16 %v198
        %v218 = vunpack.c.h.b16 %v198
        %v219 = vpack.c.b16 %v217, %v217
        %v220 = vpack.c.b16 %v218, %v218
        %vm221 = vcmask 64512
        %v223 = vsel %vm221, %v208, 0
        %v226 = vsel %vm221, %v209, 0
        %v229 = vsel %vm221, %v210, 0
        %v232 = vsel %vm221, %v211, 0
        %vm234 = vcmask 1043456
        %v236 = vsel %vm234, %v219, 0
        %v239 = vsel %vm234, %v220, 0
        %241 = vmatprep.subr.bf16.mxu0 %v239
        %242 = vmatpush1.bf16.msra.mxu0 %v236
        %243 = vmatprep.subr.bf16.mxu0 0
        %244 = vmatpush1.bf16.msra.mxu0 0
        %245 = vmatprep.subr.bf16.mxu0 0
        %246 = vmatpush1.bf16.msra.mxu0 0
        %247 = vmatprep.subr.bf16.mxu0 0
        %248 = vmatpush1.bf16.msra.mxu0 0
        %249 = vmatprep.subr.bf16.mxu0 0
        %250 = vmatpush1.bf16.msra.mxu0 0
        %251 = vmatprep.subr.bf16.mxu0 0
        %252 = vmatpush1.bf16.msra.mxu0 0
        %253 = vmatprep.subr.bf16.mxu0 0
        %254 = vmatpush1.bf16.msra.mxu0 0
        %255 = vmatprep.subr.bf16.mxu0 0
        %256 = vmatpush1.bf16.msra.mxu0 0
        %257 = vmatprep.subr.bf16.mxu0 0
        %258 = vmatpush1.bf16.msra.mxu0 0
        %259 = vmatprep.subr.bf16.mxu0 0
        %260 = vmatpush1.bf16.msra.mxu0 0
        %261 = vmatprep.subr.bf16.mxu0 0
        %262 = vmatpush1.bf16.msra.mxu0 0
        %263 = vmatprep.subr.bf16.mxu0 0
        %264 = vmatpush1.bf16.msra.mxu0 0
        %265 = vmatprep.subr.bf16.mxu0 0
        %266 = vmatpush1.bf16.msra.mxu0 0
        %267 = vmatprep.subr.bf16.mxu0 0
        %268 = vmatpush1.bf16.msra.mxu0 0
        %269 = vmatprep.subr.bf16.mxu0 0
        %270 = vmatpush1.bf16.msra.mxu0 0
        %271 = vmatprep.subr.bf16.mxu0 0
        %272 = vmatpush1.bf16.msra.mxu0 0
        %273 = vmatprep.mubr.bf16.mxu0 0
        %274 = vmatmul.mubr.bf16.gmra.mrb[0].mxu0 %v223
        %v275 = vpop.f32.mrb[0].mxu0
        %v276 = vadd.f32 0.0, %v275
        %v277 = vpop.f32.mrb[0].mxu0
        %v278 = vadd.f32 0.0, %v277
        %v279 = vpop.f32.mrb[0].mxu0
        %v280 = vadd.f32 0.0, %v279
        %v281 = vpop.f32.mrb[0].mxu0
        %v282 = vadd.f32 0.0, %v281
        %283 = vmatprep.mubr.bf16.mxu0 0
        %284 = vmatmul.mubr.bf16.gmra.mrb[0].mxu0 %v226
        %v285 = vpop.f32.mrb[0].mxu0
        %v286 = vadd.f32 0.0, %v285
        %v287 = vpop.f32.mrb[0].mxu0
        %v288 = vadd.f32 0.0, %v287
        %v289 = vpop.f32.mrb[0].mxu0
        %v290 = vadd.f32 0.0, %v289
        %v291 = vpop.f32.mrb[0].mxu0
        %v292 = vadd.f32 0.0, %v291
        %293 = vmatprep.mubr.bf16.mxu0 0
        %294 = vmatmul.mubr.bf16.gmra.mrb[0].mxu0 %v229
        %v295 = vpop.f32.mrb[0].mxu0
        %v296 = vadd.f32 0.0, %v295
        %v297 = vpop.f32.mrb[0].mxu0
        %v298 = vadd.f32 0.0, %v297
        %v299 = vpop.f32.mrb[0].mxu0
        %v300 = vadd.f32 0.0, %v299
        %v301 = vpop.f32.mrb[0].mxu0
        %v302 = vadd.f32 0.0, %v301
        %303 = vmatprep.mubr.bf16.mxu0 0
        %304 = vmatmul.mubr.bf16.gmra.mrb[0].mxu0 %v232
        %v305 = vpop.f32.mrb[0].mxu0
        %v306 = vadd.f32 0.0, %v305
        %v307 = vpop.f32.mrb[0].mxu0
        %v308 = vadd.f32 0.0, %v307
        %v309 = vpop.f32.mrb[0].mxu0
        %v310 = vadd.f32 0.0, %v309
        %v311 = vpop.f32.mrb[0].mxu0
        %v312 = vadd.f32 0.0, %v311
        %313 = vdwg.mxu0
        %v314 = vmax.f32 %v276, 0.0
        %v315 = vmax.f32 %v278, 0.0
        %v316 = vmax.f32 %v280, 0.0
        %v317 = vmax.f32 %v282, 0.0
        %v318 = vmax.f32 %v286, 0.0
        %v319 = vmax.f32 %v288, 0.0
        %v320 = vmax.f32 %v290, 0.0
        %v321 = vmax.f32 %v292, 0.0
        %v322 = vmax.f32 %v296, 0.0
        %v323 = vmax.f32 %v298, 0.0
        %v324 = vmax.f32 %v300, 0.0
        %v325 = vmax.f32 %v302, 0.0
        %v326 = vmax.f32 %v306, 0.0
        %v327 = vmax.f32 %v308, 0.0
        %v328 = vmax.f32 %v310, 0.0
        %v329 = vmax.f32 %v312, 0.0
        %v330 = vadd.f32 %v314, %v316
        %v331 = vadd.f32 %v330, %v318
        %v332 = vadd.f32 %v331, %v320
        %v333 = vadd.f32 %v332, %v322
        %v334 = vadd.f32 %v333, %v324
        %v335 = vadd.f32 %v334, %v326
        %v336 = vadd.f32 %v335, %v328
        %v337 = vrot.slane %v336, 4
        %v338 = vadd.f32 %v336, %v337
        %v339 = vrot.slane %v338, 2
        %v340 = vadd.f32 %v338, %v339
        %v341 = vrot.slane %v340, 1
        %v342 = vadd.f32 %v340, %v341
        %v343 = vadd.f32 %v315, %v317
        %v344 = vadd.f32 %v343, %v319
        %v345 = vadd.f32 %v344, %v321
        %v346 = vadd.f32 %v345, %v323
        %v347 = vadd.f32 %v346, %v325
        %v348 = vadd.f32 %v347, %v327
        %v349 = vadd.f32 %v348, %v329
        %v350 = vrot.slane %v349, 4
        %v351 = vadd.f32 %v349, %v350
        %v352 = vrot.slane %v351, 2
        %v353 = vadd.f32 %v351, %v352
        %v354 = vrot.slane %v353, 1
        %v355 = vadd.f32 %v353, %v354
        %v356 = vadd.f32 %v342, 0.0
        %v357 = vadd.f32 %v355, 0.0
        %v358 = vld [vmem:[%s189] ss:$8 sm:$0x3]
        %v361 = vcombine.low %v356, %v357
        %v363 = vunpack.c.l.s4 1966171168
        %v364 = vunpack.c.0.s8 %v363
        %v365 = vlaneseq
        %v366 = vshrl.u32 %v365, 7
        %v367 = vsub.s32 %v364, %v366
        %v368 = vrot.slane %v361, %v367
        %v370 = vunpack.c.l.s4 1966171168
        %v371 = vunpack.c.0.s8 %v370
        %v372 = vlaneseq
        %v373 = vshrl.u32 %v372, 7
        %v374 = vsub.s32 %v371, %v373
        %v375 = vrot.slane %v368, %v374
        %v377 = vadd.f32 %v358, %v375
        %v378 = vlaneseq
        %vm379 = vcmp.ge.s32.totalorder %v378, 0
        %vm380 = vcmp.lt.s32.totalorder %v378, 256
        %vm381 = vmand %vm379, %vm380
        %382 = vst.msk [vmem:[%s189] ss:$8 sm:$0x3] %vm381, %v377
        %383 = vst.msk [vmem:[%s189] ss:$8 sm:$0x0] %vm381, %v377
        %s384 = scalar_lea.vmem %s165, 4 [#allocation2]
        %v385 = vld [vmem:[%s384] sm:$0xf]
        %386 = vxpose.xlu0.c.b16.start [1/8] %v385, 128
        %387 = vxpose.xlu0.c.b16.cont [2/8] 0, 128
        %388 = vxpose.xlu0.c.b16.cont [3/8] 0, 128
        %389 = vxpose.xlu0.c.b16.cont [4/8] 0, 128
        %390 = vxpose.xlu0.c.b16.cont [5/8] 0, 128
        %391 = vxpose.xlu0.c.b16.cont [6/8] 0, 128
        %392 = vxpose.xlu0.c.b16.cont [7/8] 0, 128
        %393 = vxpose.xlu0.c.b16.end [8/8] 0, 128
        %v394 = vpop.trf.xlu0
        %v395 = vpop.trf.xlu0
        %v396 = vpop.trf.xlu0
        %v397 = vpop.trf.xlu0
        %v398 = vpop.trf.xlu0
        %v399 = vpop.trf.xlu0
        %v400 = vpop.trf.xlu0
        %v401 = vpop.trf.xlu0
        %v403 = vsel %vm221, %v394, 0
        %v406 = vsel %vm221, %v395, 0
        %v409 = vsel %vm221, %v396, 0
        %v412 = vsel %vm221, %v397, 0
        %414 = vmatprep.subr.bf16.mxu0 %v239
        %415 = vmatpush1.bf16.msra.mxu0 %v236
        %416 = vmatprep.subr.bf16.mxu0 0
        %417 = vmatpush1.bf16.msra.mxu0 0
        %418 = vmatprep.subr.bf16.mxu0 0
        %419 = vmatpush1.bf16.msra.mxu0 0
        %420 = vmatprep.subr.bf16.mxu0 0
        %421 = vmatpush1.bf16.msra.mxu0 0
        %422 = vmatprep.subr.bf16.mxu0 0
        %423 = vmatpush1.bf16.msra.mxu0 0
        %424 = vmatprep.subr.bf16.mxu0 0
        %425 = vmatpush1.bf16.msra.mxu0 0
        %426 = vmatprep.subr.bf16.mxu0 0
        %427 = vmatpush1.bf16.msra.mxu0 0
        %428 = vmatprep.subr.bf16.mxu0 0
        %429 = vmatpush1.bf16.msra.mxu0 0
        %430 = vmatprep.subr.bf16.mxu0 0
        %431 = vmatpush1.bf16.msra.mxu0 0
        %432 = vmatprep.subr.bf16.mxu0 0
        %433 = vmatpush1.bf16.msra.mxu0 0
        %434 = vmatprep.subr.bf16.mxu0 0
        %435 = vmatpush1.bf16.msra.mxu0 0
        %436 = vmatprep.subr.bf16.mxu0 0
        %437 = vmatpush1.bf16.msra.mxu0 0
        %438 = vmatprep.subr.bf16.mxu0 0
        %439 = vmatpush1.bf16.msra.mxu0 0
        %440 = vmatprep.subr.bf16.mxu0 0
        %441 = vmatpush1.bf16.msra.mxu0 0
        %442 = vmatprep.subr.bf16.mxu0 0
        %443 = vmatpush1.bf16.msra.mxu0 0
        %444 = vmatprep.subr.bf16.mxu0 0
        %445 = vmatpush1.bf16.msra.mxu0 0
        %446 = vmatprep.mubr.bf16.mxu0 0
        %447 = vmatmul.mubr.bf16.gmra.mrb[0].mxu0 %v403
        %v448 = vpop.f32.mrb[0].mxu0
        %v449 = vadd.f32 0.0, %v448
        %v450 = vpop.f32.mrb[0].mxu0
        %v451 = vadd.f32 0.0, %v450
        %v452 = vpop.f32.mrb[0].mxu0
        %v453 = vadd.f32 0.0, %v452
        %v454 = vpop.f32.mrb[0].mxu0
        %v455 = vadd.f32 0.0, %v454
        %456 = vmatprep.mubr.bf16.mxu0 0
        %457 = vmatmul.mubr.bf16.gmra.mrb[0].mxu0 %v406
        %v458 = vpop.f32.mrb[0].mxu0
        %v459 = vadd.f32 0.0, %v458
        %v460 = vpop.f32.mrb[0].mxu0
        %v461 = vadd.f32 0.0, %v460
        %v462 = vpop.f32.mrb[0].mxu0
        %v463 = vadd.f32 0.0, %v462
        %v464 = vpop.f32.mrb[0].mxu0
        %v465 = vadd.f32 0.0, %v464
        %466 = vmatprep.mubr.bf16.mxu0 0
        %467 = vmatmul.mubr.bf16.gmra.mrb[0].mxu0 %v409
        %v468 = vpop.f32.mrb[0].mxu0
        %v469 = vadd.f32 0.0, %v468
        %v470 = vpop.f32.mrb[0].mxu0
        %v471 = vadd.f32 0.0, %v470
        %v472 = vpop.f32.mrb[0].mxu0
        %v473 = vadd.f32 0.0, %v472
        %v474 = vpop.f32.mrb[0].mxu0
        %v475 = vadd.f32 0.0, %v474
        %476 = vmatprep.mubr.bf16.mxu0 0
        %477 = vmatmul.mubr.bf16.gmra.mrb[0].mxu0 %v412
        %v478 = vpop.f32.mrb[0].mxu0
        %v479 = vadd.f32 0.0, %v478
        %v480 = vpop.f32.mrb[0].mxu0
        %v481 = vadd.f32 0.0, %v480
        %v482 = vpop.f32.mrb[0].mxu0
        %v483 = vadd.f32 0.0, %v482
        %v484 = vpop.f32.mrb[0].mxu0
        %v485 = vadd.f32 0.0, %v484
        %486 = vdwg.mxu0
        %v487 = vmax.f32 %v449, 0.0
        %v488 = vmax.f32 %v451, 0.0
        %v489 = vmax.f32 %v453, 0.0
        %v490 = vmax.f32 %v455, 0.0
        %v491 = vmax.f32 %v459, 0.0
        %v492 = vmax.f32 %v461, 0.0
        %v493 = vmax.f32 %v463, 0.0
        %v494 = vmax.f32 %v465, 0.0
        %v495 = vmax.f32 %v469, 0.0
        %v496 = vmax.f32 %v471, 0.0
        %v497 = vmax.f32 %v473, 0.0
        %v498 = vmax.f32 %v475, 0.0
        %v499 = vmax.f32 %v479, 0.0
        %v500 = vmax.f32 %v481, 0.0
        %v501 = vmax.f32 %v483, 0.0
        %v502 = vmax.f32 %v485, 0.0
        %v503 = vadd.f32 %v487, %v489
        %v504 = vadd.f32 %v503, %v491
        %v505 = vadd.f32 %v504, %v493
        %v506 = vadd.f32 %v505, %v495
        %v507 = vadd.f32 %v506, %v497
        %v508 = vadd.f32 %v507, %v499
        %v509 = vadd.f32 %v508, %v501
        %v510 = vrot.slane %v509, 4
        %v511 = vadd.f32 %v509, %v510
        %v512 = vrot.slane %v511, 2
        %v513 = vadd.f32 %v511, %v512
        %v514 = vrot.slane %v513, 1
        %v515 = vadd.f32 %v513, %v514
        %v516 = vadd.f32 %v488, %v490
        %v517 = vadd.f32 %v516, %v492
        %v518 = vadd.f32 %v517, %v494
        %v519 = vadd.f32 %v518, %v496
        %v520 = vadd.f32 %v519, %v498
        %v521 = vadd.f32 %v520, %v500
        %v522 = vadd.f32 %v521, %v502
        %v523 = vrot.slane %v522, 4
        %v524 = vadd.f32 %v522, %v523
        %v525 = vrot.slane %v524, 2
        %v526 = vadd.f32 %v524, %v525
        %v527 = vrot.slane %v526, 1
        %v528 = vadd.f32 %v526, %v527
        %v529 = vadd.f32 %v515, 0.0
        %v530 = vadd.f32 %v528, 0.0
        %s531 = scalar_lea.vmem %s189, 1 [#allocation7]
        %v532 = vld [vmem:[%s531] ss:$8 sm:$0x3]
        %v535 = vcombine.low %v529, %v530
        %v537 = vunpack.c.l.s4 1966171168
        %v538 = vunpack.c.0.s8 %v537
        %v539 = vlaneseq
        %v540 = vshrl.u32 %v539, 7
        %v541 = vsub.s32 %v538, %v540
        %v542 = vrot.slane %v535, %v541
        %v544 = vunpack.c.l.s4 1966171168
        %v545 = vunpack.c.0.s8 %v544
        %v546 = vlaneseq
        %v547 = vshrl.u32 %v546, 7
        %v548 = vsub.s32 %v545, %v547
        %v549 = vrot.slane %v542, %v548
        %v551 = vadd.f32 %v532, %v549
        %552 = vst.msk [vmem:[%s531] ss:$8 sm:$0x3] %vm381, %v551
        %553 = vst.msk [vmem:[%s531] ss:$8 sm:$0x0] %vm381, %v551
        %s554 = scalar_lea.vmem %s165, 8 [#allocation2]
        %v555 = vld [vmem:[%s554] sm:$0xf]
        %556 = vxpose.xlu0.c.b16.start [1/8] %v555, 128
        %557 = vxpose.xlu0.c.b16.cont [2/8] 0, 128
        %558 = vxpose.xlu0.c.b16.cont [3/8] 0, 128
        %559 = vxpose.xlu0.c.b16.cont [4/8] 0, 128
        %560 = vxpose.xlu0.c.b16.cont [5/8] 0, 128
        %561 = vxpose.xlu0.c.b16.cont [6/8] 0, 128
        %562 = vxpose.xlu0.c.b16.cont [7/8] 0, 128
        %563 = vxpose.xlu0.c.b16.end [8/8] 0, 128
        %v564 = vpop.trf.xlu0
        %v565 = vpop.trf.xlu0
        %v566 = vpop.trf.xlu0
        %v567 = vpop.trf.xlu0
        %v568 = vpop.trf.xlu0
        %v569 = vpop.trf.xlu0
        %v570 = vpop.trf.xlu0
        %v571 = vpop.trf.xlu0
        %v573 = vsel %vm221, %v564, 0
        %v576 = vsel %vm221, %v565, 0
        %v579 = vsel %vm221, %v566, 0
        %v582 = vsel %vm221, %v567, 0
        %584 = vmatprep.subr.bf16.mxu0 %v239
        %585 = vmatpush1.bf16.msra.mxu0 %v236
        %586 = vmatprep.subr.bf16.mxu0 0
        %587 = vmatpush1.bf16.msra.mxu0 0
        %588 = vmatprep.subr.bf16.mxu0 0
        %589 = vmatpush1.bf16.msra.mxu0 0
        %590 = vmatprep.subr.bf16.mxu0 0
        %591 = vmatpush1.bf16.msra.mxu0 0
        %592 = vmatprep.subr.bf16.mxu0 0
        %593 = vmatpush1.bf16.msra.mxu0 0
        %594 = vmatprep.subr.bf16.mxu0 0
        %595 = vmatpush1.bf16.msra.mxu0 0
        %596 = vmatprep.subr.bf16.mxu0 0
        %597 = vmatpush1.bf16.msra.mxu0 0
        %598 = vmatprep.subr.bf16.mxu0 0
        %599 = vmatpush1.bf16.msra.mxu0 0
        %600 = vmatprep.subr.bf16.mxu0 0
        %601 = vmatpush1.bf16.msra.mxu0 0
        %602 = vmatprep.subr.bf16.mxu0 0
        %603 = vmatpush1.bf16.msra.mxu0 0
        %604 = vmatprep.subr.bf16.mxu0 0
        %605 = vmatpush1.bf16.msra.mxu0 0
        %606 = vmatprep.subr.bf16.mxu0 0
        %607 = vmatpush1.bf16.msra.mxu0 0
        %608 = vmatprep.subr.bf16.mxu0 0
        %609 = vmatpush1.bf16.msra.mxu0 0
        %610 = vmatprep.subr.bf16.mxu0 0
        %611 = vmatpush1.bf16.msra.mxu0 0
        %612 = vmatprep.subr.bf16.mxu0 0
        %613 = vmatpush1.bf16.msra.mxu0 0
        %614 = vmatprep.subr.bf16.mxu0 0
        %615 = vmatpush1.bf16.msra.mxu0 0
        %616 = vmatprep.mubr.bf16.mxu0 0
        %617 = vmatmul.mubr.bf16.gmra.mrb[0].mxu0 %v573
        %v618 = vpop.f32.mrb[0].mxu0
        %v619 = vadd.f32 0.0, %v618
        %v620 = vpop.f32.mrb[0].mxu0
        %v621 = vadd.f32 0.0, %v620
        %v622 = vpop.f32.mrb[0].mxu0
        %v623 = vadd.f32 0.0, %v622
        %v624 = vpop.f32.mrb[0].mxu0
        %v625 = vadd.f32 0.0, %v624
        %626 = vmatprep.mubr.bf16.mxu0 0
        %627 = vmatmul.mubr.bf16.gmra.mrb[0].mxu0 %v576
        %v628 = vpop.f32.mrb[0].mxu0
        %v629 = vadd.f32 0.0, %v628
        %v630 = vpop.f32.mrb[0].mxu0
        %v631 = vadd.f32 0.0, %v630
        %v632 = vpop.f32.mrb[0].mxu0
        %v633 = vadd.f32 0.0, %v632
        %v634 = vpop.f32.mrb[0].mxu0
        %v635 = vadd.f32 0.0, %v634
        %636 = vmatprep.mubr.bf16.mxu0 0
        %637 = vmatmul.mubr.bf16.gmra.mrb[0].mxu0 %v579
        %v638 = vpop.f32.mrb[0].mxu0
        %v639 = vadd.f32 0.0, %v638
        %v640 = vpop.f32.mrb[0].mxu0
        %v641 = vadd.f32 0.0, %v640
        %v642 = vpop.f32.mrb[0].mxu0
        %v643 = vadd.f32 0.0, %v642
        %v644 = vpop.f32.mrb[0].mxu0
        %v645 = vadd.f32 0.0, %v644
        %646 = vmatprep.mubr.bf16.mxu0 0
        %647 = vmatmul.mubr.bf16.gmra.mrb[0].mxu0 %v582
        %v648 = vpop.f32.mrb[0].mxu0
        %v649 = vadd.f32 0.0, %v648
        %v650 = vpop.f32.mrb[0].mxu0
        %v651 = vadd.f32 0.0, %v650
        %v652 = vpop.f32.mrb[0].mxu0
        %v653 = vadd.f32 0.0, %v652
        %v654 = vpop.f32.mrb[0].mxu0
        %v655 = vadd.f32 0.0, %v654
        %656 = vdwg.mxu0
        %v657 = vmax.f32 %v619, 0.0
        %v658 = vmax.f32 %v621, 0.0
        %v659 = vmax.f32 %v623, 0.0
        %v660 = vmax.f32 %v625, 0.0
        %v661 = vmax.f32 %v629, 0.0
        %v662 = vmax.f32 %v631, 0.0
        %v663 = vmax.f32 %v633, 0.0
        %v664 = vmax.f32 %v635, 0.0
        %v665 = vmax.f32 %v639, 0.0
        %v666 = vmax.f32 %v641, 0.0
        %v667 = vmax.f32 %v643, 0.0
        %v668 = vmax.f32 %v645, 0.0
        %v669 = vmax.f32 %v649, 0.0
        %v670 = vmax.f32 %v651, 0.0
        %v671 = vmax.f32 %v653, 0.0
        %v672 = vmax.f32 %v655, 0.0
        %v673 = vadd.f32 %v657, %v659
        %v674 = vadd.f32 %v673, %v661
        %v675 = vadd.f32 %v674, %v663
        %v676 = vadd.f32 %v675, %v665
        %v677 = vadd.f32 %v676, %v667
        %v678 = vadd.f32 %v677, %v669
        %v679 = vadd.f32 %v678, %v671
        %v680 = vrot.slane %v679, 4
        %v681 = vadd.f32 %v679, %v680
        %v682 = vrot.slane %v681, 2
        %v683 = vadd.f32 %v681, %v682
        %v684 = vrot.slane %v683, 1
        %v685 = vadd.f32 %v683, %v684
        %v686 = vadd.f32 %v658, %v660
        %v687 = vadd.f32 %v686, %v662
        %v688 = vadd.f32 %v687, %v664
        %v689 = vadd.f32 %v688, %v666
        %v690 = vadd.f32 %v689, %v668
        %v691 = vadd.f32 %v690, %v670
        %v692 = vadd.f32 %v691, %v672
        %v693 = vrot.slane %v692, 4
        %v694 = vadd.f32 %v692, %v693
        %v695 = vrot.slane %v694, 2
        %v696 = vadd.f32 %v694, %v695
        %v697 = vrot.slane %v696, 1
        %v698 = vadd.f32 %v696, %v697
        %v699 = vadd.f32 %v685, 0.0
        %v700 = vadd.f32 %v698, 0.0
        %s701 = scalar_lea.vmem %s189, 2 [#allocation7]
        %v702 = vld [vmem:[%s701] ss:$8 sm:$0x3]
        %v705 = vcombine.low %v699, %v700
        %v707 = vunpack.c.l.s4 1966171168
        %v708 = vunpack.c.0.s8 %v707
        %v709 = vlaneseq
        %v710 = vshrl.u32 %v709, 7
        %v711 = vsub.s32 %v708, %v710
        %v712 = vrot.slane %v705, %v711
        %v714 = vunpack.c.l.s4 1966171168
        %v715 = vunpack.c.0.s8 %v714
        %v716 = vlaneseq
        %v717 = vshrl.u32 %v716, 7
        %v718 = vsub.s32 %v715, %v717
        %v719 = vrot.slane %v712, %v718
        %v721 = vadd.f32 %v702, %v719
        %722 = vst.msk [vmem:[%s701] ss:$8 sm:$0x3] %vm381, %v721
        %723 = vst.msk [vmem:[%s701] ss:$8 sm:$0x0] %vm381, %v721
        %s724 = scalar_lea.vmem %s165, 12 [#allocation2]
        %v725 = vld [vmem:[%s724] sm:$0xf]
        %726 = vxpose.xlu0.c.b16.start [1/8] %v725, 128
        %727 = vxpose.xlu0.c.b16.cont [2/8] 0, 128
        %728 = vxpose.xlu0.c.b16.cont [3/8] 0, 128
        %729 = vxpose.xlu0.c.b16.cont [4/8] 0, 128
        %730 = vxpose.xlu0.c.b16.cont [5/8] 0, 128
        %731 = vxpose.xlu0.c.b16.cont [6/8] 0, 128
        %732 = vxpose.xlu0.c.b16.cont [7/8] 0, 128
        %733 = vxpose.xlu0.c.b16.end [8/8] 0, 128
        %v734 = vpop.trf.xlu0
        %v735 = vpop.trf.xlu0
        %v736 = vpop.trf.xlu0
        %v737 = vpop.trf.xlu0
        %v738 = vpop.trf.xlu0
        %v739 = vpop.trf.xlu0
        %v740 = vpop.trf.xlu0
        %v741 = vpop.trf.xlu0
        %v743 = vsel %vm221, %v734, 0
        %v746 = vsel %vm221, %v735, 0
        %v749 = vsel %vm221, %v736, 0
        %v752 = vsel %vm221, %v737, 0
        %754 = vmatprep.subr.bf16.mxu0 %v239
        %755 = vmatpush1.bf16.msra.mxu0 %v236
        %756 = vmatprep.subr.bf16.mxu0 0
        %757 = vmatpush1.bf16.msra.mxu0 0
        %758 = vmatprep.subr.bf16.mxu0 0
        %759 = vmatpush1.bf16.msra.mxu0 0
        %760 = vmatprep.subr.bf16.mxu0 0
        %761 = vmatpush1.bf16.msra.mxu0 0
        %762 = vmatprep.subr.bf16.mxu0 0
        %763 = vmatpush1.bf16.msra.mxu0 0
        %764 = vmatprep.subr.bf16.mxu0 0
        %765 = vmatpush1.bf16.msra.mxu0 0
        %766 = vmatprep.subr.bf16.mxu0 0
        %767 = vmatpush1.bf16.msra.mxu0 0
        %768 = vmatprep.subr.bf16.mxu0 0
        %769 = vmatpush1.bf16.msra.mxu0 0
        %770 = vmatprep.subr.bf16.mxu0 0
        %771 = vmatpush1.bf16.msra.mxu0 0
        %772 = vmatprep.subr.bf16.mxu0 0
        %773 = vmatpush1.bf16.msra.mxu0 0
        %774 = vmatprep.subr.bf16.mxu0 0
        %775 = vmatpush1.bf16.msra.mxu0 0
        %776 = vmatprep.subr.bf16.mxu0 0
        %777 = vmatpush1.bf16.msra.mxu0 0
        %778 = vmatprep.subr.bf16.mxu0 0
        %779 = vmatpush1.bf16.msra.mxu0 0
        %780 = vmatprep.subr.bf16.mxu0 0
        %781 = vmatpush1.bf16.msra.mxu0 0
        %782 = vmatprep.subr.bf16.mxu0 0
        %783 = vmatpush1.bf16.msra.mxu0 0
        %784 = vmatprep.subr.bf16.mxu0 0
        %785 = vmatpush1.bf16.msra.mxu0 0
        %786 = vmatprep.mubr.bf16.mxu0 0
        %787 = vmatmul.mubr.bf16.gmra.mrb[0].mxu0 %v743
        %v788 = vpop.f32.mrb[0].mxu0
        %v789 = vadd.f32 0.0, %v788
        %v790 = vpop.f32.mrb[0].mxu0
        %v791 = vadd.f32 0.0, %v790
        %v792 = vpop.f32.mrb[0].mxu0
        %v793 = vadd.f32 0.0, %v792
        %v794 = vpop.f32.mrb[0].mxu0
        %v795 = vadd.f32 0.0, %v794
        %796 = vmatprep.mubr.bf16.mxu0 0
        %797 = vmatmul.mubr.bf16.gmra.mrb[0].mxu0 %v746
        %v798 = vpop.f32.mrb[0].mxu0
        %v799 = vadd.f32 0.0, %v798
        %v800 = vpop.f32.mrb[0].mxu0
        %v801 = vadd.f32 0.0, %v800
        %v802 = vpop.f32.mrb[0].mxu0
        %v803 = vadd.f32 0.0, %v802
        %v804 = vpop.f32.mrb[0].mxu0
        %v805 = vadd.f32 0.0, %v804
        %806 = vmatprep.mubr.bf16.mxu0 0
        %807 = vmatmul.mubr.bf16.gmra.mrb[0].mxu0 %v749
        %v808 = vpop.f32.mrb[0].mxu0
        %v809 = vadd.f32 0.0, %v808
        %v810 = vpop.f32.mrb[0].mxu0
        %v811 = vadd.f32 0.0, %v810
        %v812 = vpop.f32.mrb[0].mxu0
        %v813 = vadd.f32 0.0, %v812
        %v814 = vpop.f32.mrb[0].mxu0
        %v815 = vadd.f32 0.0, %v814
        %816 = vmatprep.mubr.bf16.mxu0 0
        %817 = vmatmul.mubr.bf16.gmra.mrb[0].mxu0 %v752
        %v818 = vpop.f32.mrb[0].mxu0
        %v819 = vadd.f32 0.0, %v818
        %v820 = vpop.f32.mrb[0].mxu0
        %v821 = vadd.f32 0.0, %v820
        %v822 = vpop.f32.mrb[0].mxu0
        %v823 = vadd.f32 0.0, %v822
        %v824 = vpop.f32.mrb[0].mxu0
        %v825 = vadd.f32 0.0, %v824
        %826 = vdwg.mxu0
        %v827 = vmax.f32 %v789, 0.0
        %v828 = vmax.f32 %v791, 0.0
        %v829 = vmax.f32 %v793, 0.0
        %v830 = vmax.f32 %v795, 0.0
        %v831 = vmax.f32 %v799, 0.0
        %v832 = vmax.f32 %v801, 0.0
        %v833 = vmax.f32 %v803, 0.0
        %v834 = vmax.f32 %v805, 0.0
        %v835 = vmax.f32 %v809, 0.0
        %v836 = vmax.f32 %v811, 0.0
        %v837 = vmax.f32 %v813, 0.0
        %v838 = vmax.f32 %v815, 0.0
        %v839 = vmax.f32 %v819, 0.0
        %v840 = vmax.f32 %v821, 0.0
        %v841 = vmax.f32 %v823, 0.0
        %v842 = vmax.f32 %v825, 0.0
        %v843 = vadd.f32 %v827, %v829
        %v844 = vadd.f32 %v843, %v831
        %v845 = vadd.f32 %v844, %v833
        %v846 = vadd.f32 %v845, %v835
        %v847 = vadd.f32 %v846, %v837
        %v848 = vadd.f32 %v847, %v839
        %v849 = vadd.f32 %v848, %v841
        %v850 = vrot.slane %v849, 4
        %v851 = vadd.f32 %v849, %v850
        %v852 = vrot.slane %v851, 2
        %v853 = vadd.f32 %v851, %v852
        %v854 = vrot.slane %v853, 1
        %v855 = vadd.f32 %v853, %v854
        %v856 = vadd.f32 %v828, %v830
        %v857 = vadd.f32 %v856, %v832
        %v858 = vadd.f32 %v857, %v834
        %v859 = vadd.f32 %v858, %v836
        %v860 = vadd.f32 %v859, %v838
        %v861 = vadd.f32 %v860, %v840
        %v862 = vadd.f32 %v861, %v842
        %v863 = vrot.slane %v862, 4
        %v864 = vadd.f32 %v862, %v863
        %v865 = vrot.slane %v864, 2
        %v866 = vadd.f32 %v864, %v865
        %v867 = vrot.slane %v866, 1
        %v868 = vadd.f32 %v866, %v867
        %v869 = vadd.f32 %v855, 0.0
        %v870 = vadd.f32 %v868, 0.0
        %s871 = scalar_lea.vmem %s189, 3 [#allocation7]
        %v872 = vld [vmem:[%s871] ss:$8 sm:$0x3]
        %v875 = vcombine.low %v869, %v870
        %v877 = vunpack.c.l.s4 1966171168
        %v878 = vunpack.c.0.s8 %v877
        %v879 = vlaneseq
        %v880 = vshrl.u32 %v879, 7
        %v881 = vsub.s32 %v878, %v880
        %v882 = vrot.slane %v875, %v881
        %v884 = vunpack.c.l.s4 1966171168
        %v885 = vunpack.c.0.s8 %v884
        %v886 = vlaneseq
        %v887 = vshrl.u32 %v886, 7
        %v888 = vsub.s32 %v885, %v887
        %v889 = vrot.slane %v882, %v888
        %v891 = vadd.f32 %v872, %v889
        %892 = vst.msk [vmem:[%s871] ss:$8 sm:$0x3] %vm381, %v891
        %893 = vst.msk [vmem:[%s871] ss:$8 sm:$0x0] %vm381, %v891
        %s894 = scalar_lea.vmem %s165, 16 [#allocation2]
        %v895 = vld [vmem:[%s894] sm:$0xf]
        %896 = vxpose.xlu0.c.b16.start [1/8] %v895, 128
        %897 = vxpose.xlu0.c.b16.cont [2/8] 0, 128
        %898 = vxpose.xlu0.c.b16.cont [3/8] 0, 128
        %899 = vxpose.xlu0.c.b16.cont [4/8] 0, 128
        %900 = vxpose.xlu0.c.b16.cont [5/8] 0, 128
        %901 = vxpose.xlu0.c.b16.cont [6/8] 0, 128
        %902 = vxpose.xlu0.c.b16.cont [7/8] 0, 128
        %903 = vxpose.xlu0.c.b16.end [8/8] 0, 128
        %v904 = vpop.trf.xlu0
        %v905 = vpop.trf.xlu0
        %v906 = vpop.trf.xlu0
        %v907 = vpop.trf.xlu0
        %v908 = vpop.trf.xlu0
        %v909 = vpop.trf.xlu0
        %v910 = vpop.trf.xlu0
        %v911 = vpop.trf.xlu0
        %v913 = vsel %vm221, %v904, 0
        %v916 = vsel %vm221, %v905, 0
        %v919 = vsel %vm221, %v906, 0
        %v922 = vsel %vm221, %v907, 0
        %924 = vmatprep.subr.bf16.mxu0 %v239
        %925 = vmatpush1.bf16.msra.mxu0 %v236
        %926 = vmatprep.subr.bf16.mxu0 0
        %927 = vmatpush1.bf16.msra.mxu0 0
        %928 = vmatprep.subr.bf16.mxu0 0
        %929 = vmatpush1.bf16.msra.mxu0 0
        %930 = vmatprep.subr.bf16.mxu0 0
        %931 = vmatpush1.bf16.msra.mxu0 0
        %932 = vmatprep.subr.bf16.mxu0 0
        %933 = vmatpush1.bf16.msra.mxu0 0
        %934 = vmatprep.subr.bf16.mxu0 0
        %935 = vmatpush1.bf16.msra.mxu0 0
        %936 = vmatprep.subr.bf16.mxu0 0
        %937 = vmatpush1.bf16.msra.mxu0 0
        %938 = vmatprep.subr.bf16.mxu0 0
        %939 = vmatpush1.bf16.msra.mxu0 0
        %940 = vmatprep.subr.bf16.mxu0 0
        %941 = vmatpush1.bf16.msra.mxu0 0
        %942 = vmatprep.subr.bf16.mxu0 0
        %943 = vmatpush1.bf16.msra.mxu0 0
        %944 = vmatprep.subr.bf16.mxu0 0
        %945 = vmatpush1.bf16.msra.mxu0 0
        %946 = vmatprep.subr.bf16.mxu0 0
        %947 = vmatpush1.bf16.msra.mxu0 0
        %948 = vmatprep.subr.bf16.mxu0 0
        %949 = vmatpush1.bf16.msra.mxu0 0
        %950 = vmatprep.subr.bf16.mxu0 0
        %951 = vmatpush1.bf16.msra.mxu0 0
        %952 = vmatprep.subr.bf16.mxu0 0
        %953 = vmatpush1.bf16.msra.mxu0 0
        %954 = vmatprep.subr.bf16.mxu0 0
        %955 = vmatpush1.bf16.msra.mxu0 0
        %956 = vmatprep.mubr.bf16.mxu0 0
        %957 = vmatmul.mubr.bf16.gmra.mrb[0].mxu0 %v913
        %v958 = vpop.f32.mrb[0].mxu0
        %v959 = vadd.f32 0.0, %v958
        %v960 = vpop.f32.mrb[0].mxu0
        %v961 = vadd.f32 0.0, %v960
        %v962 = vpop.f32.mrb[0].mxu0
        %v963 = vadd.f32 0.0, %v962
        %v964 = vpop.f32.mrb[0].mxu0
        %v965 = vadd.f32 0.0, %v964
        %966 = vmatprep.mubr.bf16.mxu0 0
        %967 = vmatmul.mubr.bf16.gmra.mrb[0].mxu0 %v916
        %v968 = vpop.f32.mrb[0].mxu0
        %v969 = vadd.f32 0.0, %v968
        %v970 = vpop.f32.mrb[0].mxu0
        %v971 = vadd.f32 0.0, %v970
        %v972 = vpop.f32.mrb[0].mxu0
        %v973 = vadd.f32 0.0, %v972
        %v974 = vpop.f32.mrb[0].mxu0
        %v975 = vadd.f32 0.0, %v974
        %976 = vmatprep.mubr.bf16.mxu0 0
        %977 = vmatmul.mubr.bf16.gmra.mrb[0].mxu0 %v919
        %v978 = vpop.f32.mrb[0].mxu0
        %v979 = vadd.f32 0.0, %v978
        %v980 = vpop.f32.mrb[0].mxu0
        %v981 = vadd.f32 0.0, %v980
        %v982 = vpop.f32.mrb[0].mxu0
        %v983 = vadd.f32 0.0, %v982
        %v984 = vpop.f32.mrb[0].mxu0
        %v985 = vadd.f32 0.0, %v984
        %986 = vmatprep.mubr.bf16.mxu0 0
        %987 = vmatmul.mubr.bf16.gmra.mrb[0].mxu0 %v922
        %v988 = vpop.f32.mrb[0].mxu0
        %v989 = vadd.f32 0.0, %v988
        %v990 = vpop.f32.mrb[0].mxu0
        %v991 = vadd.f32 0.0, %v990
        %v992 = vpop.f32.mrb[0].mxu0
        %v993 = vadd.f32 0.0, %v992
        %v994 = vpop.f32.mrb[0].mxu0
        %v995 = vadd.f32 0.0, %v994
        %996 = vdwg.mxu0
        %v997 = vmax.f32 %v959, 0.0
        %v998 = vmax.f32 %v961, 0.0
        %v999 = vmax.f32 %v963, 0.0
        %v1000 = vmax.f32 %v965, 0.0
        %v1001 = vmax.f32 %v969, 0.0
        %v1002 = vmax.f32 %v971, 0.0
        %v1003 = vmax.f32 %v973, 0.0
        %v1004 = vmax.f32 %v975, 0.0
        %v1005 = vmax.f32 %v979, 0.0
        %v1006 = vmax.f32 %v981, 0.0
        %v1007 = vmax.f32 %v983, 0.0
        %v1008 = vmax.f32 %v985, 0.0
        %v1009 = vmax.f32 %v989, 0.0
        %v1010 = vmax.f32 %v991, 0.0
        %v1011 = vmax.f32 %v993, 0.0
        %v1012 = vmax.f32 %v995, 0.0
        %v1013 = vadd.f32 %v997, %v999
        %v1014 = vadd.f32 %v1013, %v1001
        %v1015 = vadd.f32 %v1014, %v1003
        %v1016 = vadd.f32 %v1015, %v1005
        %v1017 = vadd.f32 %v1016, %v1007
        %v1018 = vadd.f32 %v1017, %v1009
        %v1019 = vadd.f32 %v1018, %v1011
        %v1020 = vrot.slane %v1019, 4
        %v1021 = vadd.f32 %v1019, %v1020
        %v1022 = vrot.slane %v1021, 2
        %v1023 = vadd.f32 %v1021, %v1022
        %v1024 = vrot.slane %v1023, 1
        %v1025 = vadd.f32 %v1023, %v1024
        %v1026 = vadd.f32 %v998, %v1000
        %v1027 = vadd.f32 %v1026, %v1002
        %v1028 = vadd.f32 %v1027, %v1004
        %v1029 = vadd.f32 %v1028, %v1006
        %v1030 = vadd.f32 %v1029, %v1008
        %v1031 = vadd.f32 %v1030, %v1010
        %v1032 = vadd.f32 %v1031, %v1012
        %v1033 = vrot.slane %v1032, 4
        %v1034 = vadd.f32 %v1032, %v1033
        %v1035 = vrot.slane %v1034, 2
        %v1036 = vadd.f32 %v1034, %v1035
        %v1037 = vrot.slane %v1036, 1
        %v1038 = vadd.f32 %v1036, %v1037
        %v1039 = vadd.f32 %v1025, 0.0
        %v1040 = vadd.f32 %v1038, 0.0
        %s1041 = scalar_lea.vmem %s189, 4 [#allocation7]
        %v1042 = vld [vmem:[%s1041] ss:$8 sm:$0x3]
        %v1045 = vcombine.low %v1039, %v1040
        %v1047 = vunpack.c.l.s4 1966171168
        %v1048 = vunpack.c.0.s8 %v1047
        %v1049 = vlaneseq
        %v1050 = vshrl.u32 %v1049, 7
        %v1051 = vsub.s32 %v1048, %v1050
        %v1052 = vrot.slane %v1045, %v1051
        %v1054 = vunpack.c.l.s4 1966171168
        %v1055 = vunpack.c.0.s8 %v1054
        %v1056 = vlaneseq
        %v1057 = vshrl.u32 %v1056, 7
        %v1058 = vsub.s32 %v1055, %v1057
        %v1059 = vrot.slane %v1052, %v1058
        %v1061 = vadd.f32 %v1042, %v1059
        %1062 = vst.msk [vmem:[%s1041] ss:$8 sm:$0x3] %vm381, %v1061
        %1063 = vst.msk [vmem:[%s1041] ss:$8 sm:$0x0] %vm381, %v1061
        %s1064 = scalar_lea.vmem %s165, 20 [#allocation2]
        %v1065 = vld [vmem:[%s1064] sm:$0xf]
        %1066 = vxpose.xlu0.c.b16.start [1/8] %v1065, 128
        %1067 = vxpose.xlu0.c.b16.cont [2/8] 0, 128
        %1068 = vxpose.xlu0.c.b16.cont [3/8] 0, 128
        %1069 = vxpose.xlu0.c.b16.cont [4/8] 0, 128
        %1070 = vxpose.xlu0.c.b16.cont [5/8] 0, 128
        %1071 = vxpose.xlu0.c.b16.cont [6/8] 0, 128
        %1072 = vxpose.xlu0.c.b16.cont [7/8] 0, 128
        %1073 = vxpose.xlu0.c.b16.end [8/8] 0, 128
        %v1074 = vpop.trf.xlu0
        %v1075 = vpop.trf.xlu0
        %v1076 = vpop.trf.xlu0
        %v1077 = vpop.trf.xlu0
        %v1078 = vpop.trf.xlu0
        %v1079 = vpop.trf.xlu0
        %v1080 = vpop.trf.xlu0
        %v1081 = vpop.trf.xlu0
        %v1083 = vsel %vm221, %v1074, 0
        %v1086 = vsel %vm221, %v1075, 0
        %v1089 = vsel %vm221, %v1076, 0
        %v1092 = vsel %vm221, %v1077, 0
        %1094 = vmatprep.subr.bf16.mxu0 %v239
        %1095 = vmatpush1.bf16.msra.mxu0 %v236
        %1096 = vmatprep.subr.bf16.mxu0 0
        %1097 = vmatpush1.bf16.msra.mxu0 0
        %1098 = vmatprep.subr.bf16.mxu0 0
        %1099 = vmatpush1.bf16.msra.mxu0 0
        %1100 = vmatprep.subr.bf16.mxu0 0
        %1101 = vmatpush1.bf16.msra.mxu0 0
        %1102 = vmatprep.subr.bf16.mxu0 0
        %1103 = vmatpush1.bf16.msra.mxu0 0
        %1104 = vmatprep.subr.bf16.mxu0 0
        %1105 = vmatpush1.bf16.msra.mxu0 0
        %1106 = vmatprep.subr.bf16.mxu0 0
        %1107 = vmatpush1.bf16.msra.mxu0 0
        %1108 = vmatprep.subr.bf16.mxu0 0
        %1109 = vmatpush1.bf16.msra.mxu0 0
        %1110 = vmatprep.subr.bf16.mxu0 0
        %1111 = vmatpush1.bf16.msra.mxu0 0
        %1112 = vmatprep.subr.bf16.mxu0 0
        %1113 = vmatpush1.bf16.msra.mxu0 0
        %1114 = vmatprep.subr.bf16.mxu0 0
        %1115 = vmatpush1.bf16.msra.mxu0 0
        %1116 = vmatprep.subr.bf16.mxu0 0
        %1117 = vmatpush1.bf16.msra.mxu0 0
        %1118 = vmatprep.subr.bf16.mxu0 0
        %1119 = vmatpush1.bf16.msra.mxu0 0
        %1120 = vmatprep.subr.bf16.mxu0 0
        %1121 = vmatpush1.bf16.msra.mxu0 0
        %1122 = vmatprep.subr.bf16.mxu0 0
        %1123 = vmatpush1.bf16.msra.mxu0 0
        %1124 = vmatprep.subr.bf16.mxu0 0
        %1125 = vmatpush1.bf16.msra.mxu0 0
        %1126 = vmatprep.mubr.bf16.mxu0 0
        %1127 = vmatmul.mubr.bf16.gmra.mrb[0].mxu0 %v1083
        %v1128 = vpop.f32.mrb[0].mxu0
        %v1129 = vadd.f32 0.0, %v1128
        %v1130 = vpop.f32.mrb[0].mxu0
        %v1131 = vadd.f32 0.0, %v1130
        %v1132 = vpop.f32.mrb[0].mxu0
        %v1133 = vadd.f32 0.0, %v1132
        %v1134 = vpop.f32.mrb[0].mxu0
        %v1135 = vadd.f32 0.0, %v1134
        %1136 = vmatprep.mubr.bf16.mxu0 0
        %1137 = vmatmul.mubr.bf16.gmra.mrb[0].mxu0 %v1086
        %v1138 = vpop.f32.mrb[0].mxu0
        %v1139 = vadd.f32 0.0, %v1138
        %v1140 = vpop.f32.mrb[0].mxu0
        %v1141 = vadd.f32 0.0, %v1140
        %v1142 = vpop.f32.mrb[0].mxu0
        %v1143 = vadd.f32 0.0, %v1142
        %v1144 = vpop.f32.mrb[0].mxu0
        %v1145 = vadd.f32 0.0, %v1144
        %1146 = vmatprep.mubr.bf16.mxu0 0
        %1147 = vmatmul.mubr.bf16.gmra.mrb[0].mxu0 %v1089
        %v1148 = vpop.f32.mrb[0].mxu0
        %v1149 = vadd.f32 0.0, %v1148
        %v1150 = vpop.f32.mrb[0].mxu0
        %v1151 = vadd.f32 0.0, %v1150
        %v1152 = vpop.f32.mrb[0].mxu0
        %v1153 = vadd.f32 0.0, %v1152
        %v1154 = vpop.f32.mrb[0].mxu0
        %v1155 = vadd.f32 0.0, %v1154
        %1156 = vmatprep.mubr.bf16.mxu0 0
        %1157 = vmatmul.mubr.bf16.gmra.mrb[0].mxu0 %v1092
        %v1158 = vpop.f32.mrb[0].mxu0
        %v1159 = vadd.f32 0.0, %v1158
        %v1160 = vpop.f32.mrb[0].mxu0
        %v1161 = vadd.f32 0.0, %v1160
        %v1162 = vpop.f32.mrb[0].mxu0
        %v1163 = vadd.f32 0.0, %v1162
        %v1164 = vpop.f32.mrb[0].mxu0
        %v1165 = vadd.f32 0.0, %v1164
        %1166 = vdwg.mxu0
        %v1167 = vmax.f32 %v1129, 0.0
        %v1168 = vmax.f32 %v1131, 0.0
        %v1169 = vmax.f32 %v1133, 0.0
        %v1170 = vmax.f32 %v1135, 0.0
        %v1171 = vmax.f32 %v1139, 0.0
        %v1172 = vmax.f32 %v1141, 0.0
        %v1173 = vmax.f32 %v1143, 0.0
        %v1174 = vmax.f32 %v1145, 0.0
        %v1175 = vmax.f32 %v1149, 0.0
        %v1176 = vmax.f32 %v1151, 0.0
        %v1177 = vmax.f32 %v1153, 0.0
        %v1178 = vmax.f32 %v1155, 0.0
        %v1179 = vmax.f32 %v1159, 0.0
        %v1180 = vmax.f32 %v1161, 0.0
        %v1181 = vmax.f32 %v1163, 0.0
        %v1182 = vmax.f32 %v1165, 0.0
        %v1183 = vadd.f32 %v1167, %v1169
        %v1184 = vadd.f32 %v1183, %v1171
        %v1185 = vadd.f32 %v1184, %v1173
        %v1186 = vadd.f32 %v1185, %v1175
        %v1187 = vadd.f32 %v1186, %v1177
        %v1188 = vadd.f32 %v1187, %v1179
        %v1189 = vadd.f32 %v1188, %v1181
        %v1190 = vrot.slane %v1189, 4
        %v1191 = vadd.f32 %v1189, %v1190
        %v1192 = vrot.slane %v1191, 2
        %v1193 = vadd.f32 %v1191, %v1192
        %v1194 = vrot.slane %v1193, 1
        %v1195 = vadd.f32 %v1193, %v1194
        %v1196 = vadd.f32 %v1168, %v1170
        %v1197 = vadd.f32 %v1196, %v1172
        %v1198 = vadd.f32 %v1197, %v1174
        %v1199 = vadd.f32 %v1198, %v1176
        %v1200 = vadd.f32 %v1199, %v1178
        %v1201 = vadd.f32 %v1200, %v1180
        %v1202 = vadd.f32 %v1201, %v1182
        %v1203 = vrot.slane %v1202, 4
        %v1204 = vadd.f32 %v1202, %v1203
        %v1205 = vrot.slane %v1204, 2
        %v1206 = vadd.f32 %v1204, %v1205
        %v1207 = vrot.slane %v1206, 1
        %v1208 = vadd.f32 %v1206, %v1207
        %v1209 = vadd.f32 %v1195, 0.0
        %v1210 = vadd.f32 %v1208, 0.0
        %s1211 = scalar_lea.vmem %s189, 5 [#allocation7]
        %v1212 = vld [vmem:[%s1211] ss:$8 sm:$0x3]
        %v1215 = vcombine.low %v1209, %v1210
        %v1217 = vunpack.c.l.s4 1966171168
        %v1218 = vunpack.c.0.s8 %v1217
        %v1219 = vlaneseq
        %v1220 = vshrl.u32 %v1219, 7
        %v1221 = vsub.s32 %v1218, %v1220
        %v1222 = vrot.slane %v1215, %v1221
        %v1224 = vunpack.c.l.s4 1966171168
        %v1225 = vunpack.c.0.s8 %v1224
        %v1226 = vlaneseq
        %v1227 = vshrl.u32 %v1226, 7
        %v1228 = vsub.s32 %v1225, %v1227
        %v1229 = vrot.slane %v1222, %v1228
        %v1231 = vadd.f32 %v1212, %v1229
        %1232 = vst.msk [vmem:[%s1211] ss:$8 sm:$0x3] %vm381, %v1231
        %1233 = vst.msk [vmem:[%s1211] ss:$8 sm:$0x0] %vm381, %v1231
        %s1234 = scalar_lea.vmem %s165, 24 [#allocation2]
        %v1235 = vld [vmem:[%s1234] sm:$0xf]
        %1236 = vxpose.xlu0.c.b16.start [1/8] %v1235, 128
        %1237 = vxpose.xlu0.c.b16.cont [2/8] 0, 128
        %1238 = vxpose.xlu0.c.b16.cont [3/8] 0, 128
        %1239 = vxpose.xlu0.c.b16.cont [4/8] 0, 128
        %1240 = vxpose.xlu0.c.b16.cont [5/8] 0, 128
        %1241 = vxpose.xlu0.c.b16.cont [6/8] 0, 128
        %1242 = vxpose.xlu0.c.b16.cont [7/8] 0, 128
        %1243 = vxpose.xlu0.c.b16.end [8/8] 0, 128
        %v1244 = vpop.trf.xlu0
        %v1245 = vpop.trf.xlu0
        %v1246 = vpop.trf.xlu0
        %v1247 = vpop.trf.xlu0
        %v1248 = vpop.trf.xlu0
        %v1249 = vpop.trf.xlu0
        %v1250 = vpop.trf.xlu0
        %v1251 = vpop.trf.xlu0
        %v1253 = vsel %vm221, %v1244, 0
        %v1256 = vsel %vm221, %v1245, 0
        %v1259 = vsel %vm221, %v1246, 0
        %v1262 = vsel %vm221, %v1247, 0
        %1264 = vmatprep.subr.bf16.mxu0 %v239
        %1265 = vmatpush1.bf16.msra.mxu0 %v236
        %1266 = vmatprep.subr.bf16.mxu0 0
        %1267 = vmatpush1.bf16.msra.mxu0 0
        %1268 = vmatprep.subr.bf16.mxu0 0
        %1269 = vmatpush1.bf16.msra.mxu0 0
        %1270 = vmatprep.subr.bf16.mxu0 0
        %1271 = vmatpush1.bf16.msra.mxu0 0
        %1272 = vmatprep.subr.bf16.mxu0 0
        %1273 = vmatpush1.bf16.msra.mxu0 0
        %1274 = vmatprep.subr.bf16.mxu0 0
        %1275 = vmatpush1.bf16.msra.mxu0 0
        %1276 = vmatprep.subr.bf16.mxu0 0
        %1277 = vmatpush1.bf16.msra.mxu0 0
        %1278 = vmatprep.subr.bf16.mxu0 0
        %1279 = vmatpush1.bf16.msra.mxu0 0
        %1280 = vmatprep.subr.bf16.mxu0 0
        %1281 = vmatpush1.bf16.msra.mxu0 0
        %1282 = vmatprep.subr.bf16.mxu0 0
        %1283 = vmatpush1.bf16.msra.mxu0 0
        %1284 = vmatprep.subr.bf16.mxu0 0
        %1285 = vmatpush1.bf16.msra.mxu0 0
        %1286 = vmatprep.subr.bf16.mxu0 0
        %1287 = vmatpush1.bf16.msra.mxu0 0
        %1288 = vmatprep.subr.bf16.mxu0 0
        %1289 = vmatpush1.bf16.msra.mxu0 0
        %1290 = vmatprep.subr.bf16.mxu0 0
        %1291 = vmatpush1.bf16.msra.mxu0 0
        %1292 = vmatprep.subr.bf16.mxu0 0
        %1293 = vmatpush1.bf16.msra.mxu0 0
        %1294 = vmatprep.subr.bf16.mxu0 0
        %1295 = vmatpush1.bf16.msra.mxu0 0
        %1296 = vmatprep.mubr.bf16.mxu0 0
        %1297 = vmatmul.mubr.bf16.gmra.mrb[0].mxu0 %v1253
        %v1298 = vpop.f32.mrb[0].mxu0
        %v1299 = vadd.f32 0.0, %v1298
        %v1300 = vpop.f32.mrb[0].mxu0
        %v1301 = vadd.f32 0.0, %v1300
        %v1302 = vpop.f32.mrb[0].mxu0
        %v1303 = vadd.f32 0.0, %v1302
        %v1304 = vpop.f32.mrb[0].mxu0
        %v1305 = vadd.f32 0.0, %v1304
        %1306 = vmatprep.mubr.bf16.mxu0 0
        %1307 = vmatmul.mubr.bf16.gmra.mrb[0].mxu0 %v1256
        %v1308 = vpop.f32.mrb[0].mxu0
        %v1309 = vadd.f32 0.0, %v1308
        %v1310 = vpop.f32.mrb[0].mxu0
        %v1311 = vadd.f32 0.0, %v1310
        %v1312 = vpop.f32.mrb[0].mxu0
        %v1313 = vadd.f32 0.0, %v1312
        %v1314 = vpop.f32.mrb[0].mxu0
        %v1315 = vadd.f32 0.0, %v1314
        %1316 = vmatprep.mubr.bf16.mxu0 0
        %1317 = vmatmul.mubr.bf16.gmra.mrb[0].mxu0 %v1259
        %v1318 = vpop.f32.mrb[0].mxu0
        %v1319 = vadd.f32 0.0, %v1318
        %v1320 = vpop.f32.mrb[0].mxu0
        %v1321 = vadd.f32 0.0, %v1320
        %v1322 = vpop.f32.mrb[0].mxu0
        %v1323 = vadd.f32 0.0, %v1322
        %v1324 = vpop.f32.mrb[0].mxu0
        %v1325 = vadd.f32 0.0, %v1324
        %1326 = vmatprep.mubr.bf16.mxu0 0
        %1327 = vmatmul.mubr.bf16.gmra.mrb[0].mxu0 %v1262
        %v1328 = vpop.f32.mrb[0].mxu0
        %v1329 = vadd.f32 0.0, %v1328
        %v1330 = vpop.f32.mrb[0].mxu0
        %v1331 = vadd.f32 0.0, %v1330
        %v1332 = vpop.f32.mrb[0].mxu0
        %v1333 = vadd.f32 0.0, %v1332
        %v1334 = vpop.f32.mrb[0].mxu0
        %v1335 = vadd.f32 0.0, %v1334
        %1336 = vdwg.mxu0
        %v1337 = vmax.f32 %v1299, 0.0
        %v1338 = vmax.f32 %v1301, 0.0
        %v1339 = vmax.f32 %v1303, 0.0
        %v1340 = vmax.f32 %v1305, 0.0
        %v1341 = vmax.f32 %v1309, 0.0
        %v1342 = vmax.f32 %v1311, 0.0
        %v1343 = vmax.f32 %v1313, 0.0
        %v1344 = vmax.f32 %v1315, 0.0
        %v1345 = vmax.f32 %v1319, 0.0
        %v1346 = vmax.f32 %v1321, 0.0
        %v1347 = vmax.f32 %v1323, 0.0
        %v1348 = vmax.f32 %v1325, 0.0
        %v1349 = vmax.f32 %v1329, 0.0
        %v1350 = vmax.f32 %v1331, 0.0
        %v1351 = vmax.f32 %v1333, 0.0
        %v1352 = vmax.f32 %v1335, 0.0
        %v1353 = vadd.f32 %v1337, %v1339
        %v1354 = vadd.f32 %v1353, %v1341
        %v1355 = vadd.f32 %v1354, %v1343
        %v1356 = vadd.f32 %v1355, %v1345
        %v1357 = vadd.f32 %v1356, %v1347
        %v1358 = vadd.f32 %v1357, %v1349
        %v1359 = vadd.f32 %v1358, %v1351
        %v1360 = vrot.slane %v1359, 4
        %v1361 = vadd.f32 %v1359, %v1360
        %v1362 = vrot.slane %v1361, 2
        %v1363 = vadd.f32 %v1361, %v1362
        %v1364 = vrot.slane %v1363, 1
        %v1365 = vadd.f32 %v1363, %v1364
        %v1366 = vadd.f32 %v1338, %v1340
        %v1367 = vadd.f32 %v1366, %v1342
        %v1368 = vadd.f32 %v1367, %v1344
        %v1369 = vadd.f32 %v1368, %v1346
        %v1370 = vadd.f32 %v1369, %v1348
        %v1371 = vadd.f32 %v1370, %v1350
        %v1372 = vadd.f32 %v1371, %v1352
        %v1373 = vrot.slane %v1372, 4
        %v1374 = vadd.f32 %v1372, %v1373
        %v1375 = vrot.slane %v1374, 2
        %v1376 = vadd.f32 %v1374, %v1375
        %v1377 = vrot.slane %v1376, 1
        %v1378 = vadd.f32 %v1376, %v1377
        %v1379 = vadd.f32 %v1365, 0.0
        %v1380 = vadd.f32 %v1378, 0.0
        %s1381 = scalar_lea.vmem %s189, 6 [#allocation7]
        %v1382 = vld [vmem:[%s1381] ss:$8 sm:$0x3]
        %v1385 = vcombine.low %v1379, %v1380
        %v1387 = vunpack.c.l.s4 1966171168
        %v1388 = vunpack.c.0.s8 %v1387
        %v1389 = vlaneseq
        %v1390 = vshrl.u32 %v1389, 7
        %v1391 = vsub.s32 %v1388, %v1390
        %v1392 = vrot.slane %v1385, %v1391
        %v1394 = vunpack.c.l.s4 1966171168
        %v1395 = vunpack.c.0.s8 %v1394
        %v1396 = vlaneseq
        %v1397 = vshrl.u32 %v1396, 7
        %v1398 = vsub.s32 %v1395, %v1397
        %v1399 = vrot.slane %v1392, %v1398
        %v1401 = vadd.f32 %v1382, %v1399
        %1402 = vst.msk [vmem:[%s1381] ss:$8 sm:$0x3] %vm381, %v1401
        %1403 = vst.msk [vmem:[%s1381] ss:$8 sm:$0x0] %vm381, %v1401
        %s1404 = scalar_lea.vmem %s165, 28 [#allocation2]
        %v1405 = vld [vmem:[%s1404] sm:$0xf]
        %1406 = vxpose.xlu0.c.b16.start [1/8] %v1405, 128
        %1407 = vxpose.xlu0.c.b16.cont [2/8] 0, 128
        %1408 = vxpose.xlu0.c.b16.cont [3/8] 0, 128
        %1409 = vxpose.xlu0.c.b16.cont [4/8] 0, 128
        %1410 = vxpose.xlu0.c.b16.cont [5/8] 0, 128
        %1411 = vxpose.xlu0.c.b16.cont [6/8] 0, 128
        %1412 = vxpose.xlu0.c.b16.cont [7/8] 0, 128
        %1413 = vxpose.xlu0.c.b16.end [8/8] 0, 128
        %v1414 = vpop.trf.xlu0
        %v1415 = vpop.trf.xlu0
        %v1416 = vpop.trf.xlu0
        %v1417 = vpop.trf.xlu0
        %v1418 = vpop.trf.xlu0
        %v1419 = vpop.trf.xlu0
        %v1420 = vpop.trf.xlu0
        %v1421 = vpop.trf.xlu0
        %v1423 = vsel %vm221, %v1414, 0
        %v1426 = vsel %vm221, %v1415, 0
        %v1429 = vsel %vm221, %v1416, 0
        %v1432 = vsel %vm221, %v1417, 0
        %1434 = vmatprep.subr.bf16.mxu0 %v239
        %1435 = vmatpush1.bf16.msra.mxu0 %v236
        %1436 = vmatprep.subr.bf16.mxu0 0
        %1437 = vmatpush1.bf16.msra.mxu0 0
        %1438 = vmatprep.subr.bf16.mxu0 0
        %1439 = vmatpush1.bf16.msra.mxu0 0
        %1440 = vmatprep.subr.bf16.mxu0 0
        %1441 = vmatpush1.bf16.msra.mxu0 0
        %1442 = vmatprep.subr.bf16.mxu0 0
        %1443 = vmatpush1.bf16.msra.mxu0 0
        %1444 = vmatprep.subr.bf16.mxu0 0
        %1445 = vmatpush1.bf16.msra.mxu0 0
        %1446 = vmatprep.subr.bf16.mxu0 0
        %1447 = vmatpush1.bf16.msra.mxu0 0
        %1448 = vmatprep.subr.bf16.mxu0 0
        %1449 = vmatpush1.bf16.msra.mxu0 0
        %1450 = vmatprep.subr.bf16.mxu0 0
        %1451 = vmatpush1.bf16.msra.mxu0 0
        %1452 = vmatprep.subr.bf16.mxu0 0
        %1453 = vmatpush1.bf16.msra.mxu0 0
        %1454 = vmatprep.subr.bf16.mxu0 0
        %1455 = vmatpush1.bf16.msra.mxu0 0
        %1456 = vmatprep.subr.bf16.mxu0 0
        %1457 = vmatpush1.bf16.msra.mxu0 0
        %1458 = vmatprep.subr.bf16.mxu0 0
        %1459 = vmatpush1.bf16.msra.mxu0 0
        %1460 = vmatprep.subr.bf16.mxu0 0
        %1461 = vmatpush1.bf16.msra.mxu0 0
        %1462 = vmatprep.subr.bf16.mxu0 0
        %1463 = vmatpush1.bf16.msra.mxu0 0
        %1464 = vmatprep.subr.bf16.mxu0 0
        %1465 = vmatpush1.bf16.msra.mxu0 0
        %1466 = vmatprep.mubr.bf16.mxu0 0
        %1467 = vmatmul.mubr.bf16.gmra.mrb[0].mxu0 %v1423
        %v1468 = vpop.f32.mrb[0].mxu0
        %v1469 = vadd.f32 0.0, %v1468
        %v1470 = vpop.f32.mrb[0].mxu0
        %v1471 = vadd.f32 0.0, %v1470
        %v1472 = vpop.f32.mrb[0].mxu0
        %v1473 = vadd.f32 0.0, %v1472
        %v1474 = vpop.f32.mrb[0].mxu0
        %v1475 = vadd.f32 0.0, %v1474
        %1476 = vmatprep.mubr.bf16.mxu0 0
        %1477 = vmatmul.mubr.bf16.gmra.mrb[0].mxu0 %v1426
        %v1478 = vpop.f32.mrb[0].mxu0
        %v1479 = vadd.f32 0.0, %v1478
        %v1480 = vpop.f32.mrb[0].mxu0
        %v1481 = vadd.f32 0.0, %v1480
        %v1482 = vpop.f32.mrb[0].mxu0
        %v1483 = vadd.f32 0.0, %v1482
        %v1484 = vpop.f32.mrb[0].mxu0
        %v1485 = vadd.f32 0.0, %v1484
        %1486 = vmatprep.mubr.bf16.mxu0 0
        %1487 = vmatmul.mubr.bf16.gmra.mrb[0].mxu0 %v1429
        %v1488 = vpop.f32.mrb[0].mxu0
        %v1489 = vadd.f32 0.0, %v1488
        %v1490 = vpop.f32.mrb[0].mxu0
        %v1491 = vadd.f32 0.0, %v1490
        %v1492 = vpop.f32.mrb[0].mxu0
        %v1493 = vadd.f32 0.0, %v1492
        %v1494 = vpop.f32.mrb[0].mxu0
        %v1495 = vadd.f32 0.0, %v1494
        %1496 = vmatprep.mubr.bf16.mxu0 0
        %1497 = vmatmul.mubr.bf16.gmra.mrb[0].mxu0 %v1432
        %v1498 = vpop.f32.mrb[0].mxu0
        %v1499 = vadd.f32 0.0, %v1498
        %v1500 = vpop.f32.mrb[0].mxu0
        %v1501 = vadd.f32 0.0, %v1500
        %v1502 = vpop.f32.mrb[0].mxu0
        %v1503 = vadd.f32 0.0, %v1502
        %v1504 = vpop.f32.mrb[0].mxu0
        %v1505 = vadd.f32 0.0, %v1504
        %1506 = vdwg.mxu0
        %v1507 = vmax.f32 %v1469, 0.0
        %v1508 = vmax.f32 %v1471, 0.0
        %v1509 = vmax.f32 %v1473, 0.0
        %v1510 = vmax.f32 %v1475, 0.0
        %v1511 = vmax.f32 %v1479, 0.0
        %v1512 = vmax.f32 %v1481, 0.0
        %v1513 = vmax.f32 %v1483, 0.0
        %v1514 = vmax.f32 %v1485, 0.0
        %v1515 = vmax.f32 %v1489, 0.0
        %v1516 = vmax.f32 %v1491, 0.0
        %v1517 = vmax.f32 %v1493, 0.0
        %v1518 = vmax.f32 %v1495, 0.0
        %v1519 = vmax.f32 %v1499, 0.0
        %v1520 = vmax.f32 %v1501, 0.0
        %v1521 = vmax.f32 %v1503, 0.0
        %v1522 = vmax.f32 %v1505, 0.0
        %v1523 = vadd.f32 %v1507, %v1509
        %v1524 = vadd.f32 %v1523, %v1511
        %v1525 = vadd.f32 %v1524, %v1513
        %v1526 = vadd.f32 %v1525, %v1515
        %v1527 = vadd.f32 %v1526, %v1517
        %v1528 = vadd.f32 %v1527, %v1519
        %v1529 = vadd.f32 %v1528, %v1521
        %v1530 = vrot.slane %v1529, 4
        %v1531 = vadd.f32 %v1529, %v1530
        %v1532 = vrot.slane %v1531, 2
        %v1533 = vadd.f32 %v1531, %v1532
        %v1534 = vrot.slane %v1533, 1
        %v1535 = vadd.f32 %v1533, %v1534
        %v1536 = vadd.f32 %v1508, %v1510
        %v1537 = vadd.f32 %v1536, %v1512
        %v1538 = vadd.f32 %v1537, %v1514
        %v1539 = vadd.f32 %v1538, %v1516
        %v1540 = vadd.f32 %v1539, %v1518
        %v1541 = vadd.f32 %v1540, %v1520
        %v1542 = vadd.f32 %v1541, %v1522
        %v1543 = vrot.slane %v1542, 4
        %v1544 = vadd.f32 %v1542, %v1543
        %v1545 = vrot.slane %v1544, 2
        %v1546 = vadd.f32 %v1544, %v1545
        %v1547 = vrot.slane %v1546, 1
        %v1548 = vadd.f32 %v1546, %v1547
        %v1549 = vadd.f32 %v1535, 0.0
        %v1550 = vadd.f32 %v1548, 0.0
        %s1551 = scalar_lea.vmem %s189, 7 [#allocation7]
        %v1552 = vld [vmem:[%s1551] ss:$8 sm:$0x3]
        %v1555 = vcombine.low %v1549, %v1550
        %v1557 = vunpack.c.l.s4 1966171168
        %v1558 = vunpack.c.0.s8 %v1557
        %v1559 = vlaneseq
        %v1560 = vshrl.u32 %v1559, 7
        %v1561 = vsub.s32 %v1558, %v1560
        %v1562 = vrot.slane %v1555, %v1561
        %v1564 = vunpack.c.l.s4 1966171168
        %v1565 = vunpack.c.0.s8 %v1564
        %v1566 = vlaneseq
        %v1567 = vshrl.u32 %v1566, 7
        %v1568 = vsub.s32 %v1565, %v1567
        %v1569 = vrot.slane %v1562, %v1568
        %v1571 = vadd.f32 %v1552, %v1569
        %1572 = vst.msk [vmem:[%s1551] ss:$8 sm:$0x3] %vm381, %v1571
        %1573 = vst.msk [vmem:[%s1551] ss:$8 sm:$0x0] %vm381, %v1571
        %s1574 = sand.u32 %s89, 1
        %s1575 = scalar_lea.sflag [#allocation4], %s1574
        %s1576 = sand.u32 %s89, 1
        %s1577 = smul.addr %s1576, 16
        %s1578 = scalar_lea.vmem [#allocation7], %s1577
        // Predicated region
        $region41: #{tpu_custom_call.1} parent=27 // pred_check
          %p1579 = pneg %p99
        $region42: #{tpu_custom_call.1} parent=27 // pred_check_branch
          %1581 = sbr.rel (%p1579) target = $region44
        $region43: #{tpu_custom_call.1} parent=27 // pred_region
          %s1583 = ssub.s32 256, 256
          %1584 = vsyncadd %s1575, %s1583
          %s1585 = smul.addr %s24, 2
          %s1586 = smul.addr %s1585, 128
          %s1587 = scalar_lea.hbm %s2, %s1586
          %s1589 = sshll.u32 %s1578, 4
          %s1590 = int_to_ptr.vmem [resolvable:$true] %s1589
          %1592 = dma.vmem_to_hbm [thread:$0]  %s1590, 256, %s1587, %s1575
        $region44: #{tpu_custom_call.1} parent=27 // pred_fallthru
          _
      $region28: #{tpu_custom_call.1} parent=5 // pred_fallthru
        _
      %p1593 = scmp.le.s32.totalorder 2, %s15
      // Predicated region
      $region45: #{tpu_custom_call.1} parent=5 // pred_check
        %p1594 = pneg %p1593
      $region46: #{tpu_custom_call.1} parent=5 // pred_check_branch
        %1596 = sbr.rel (%p1594) target = $region48
      $region47: #{tpu_custom_call.1} parent=5 // pred_region
        %s1597 = ssub.s32 %s15, 2
        // Predicated region
        $region49: #{tpu_custom_call.1} parent=47 // pred_check
          %p1598 = pneg %p105
        $region50: #{tpu_custom_call.1} parent=47 // pred_check_branch
          %1600 = sbr.rel (%p1598) target = $region52
        $region51: #{tpu_custom_call.1} parent=47 // pred_region
          %s1601 = sand.u32 %s90, 1
          %s1602 = scalar_lea.sflag [#allocation4], %s1601
          %s1603 = sand.u32 %s90, 1
          %s1604 = smul.addr %s1603, 16
          %s1605 = scalar_lea.vmem [#allocation7], %s1604
          %1606 = dma.done %s1602, 256
        $region52: #{tpu_custom_call.1} parent=47 // pred_fallthru
          _
      $region48: #{tpu_custom_call.1} parent=5 // pred_fallthru
        _
    $region6: #{tpu_custom_call.1} parent=1 // loop_footer
      %s19 = sadd.s32 1, %s15
    $region7: #{tpu_custom_call.1} parent=1 // loop_footer_branch
      %14 = sbr.rel target = $region3
    $region8: #{tpu_custom_call.1} parent=1 // loop_exit
      _
    %1607 = vsyncpa [#allocation3], 1
    %s1608 = scalar_lea.sflag [#allocation3], 1
    %1609 = vsyncpa %s1608, 1
    %1610 = vsyncpa [#allocation6], 1
    %1611 = vsyncpa [#allocation4], 1
    %s1612 = scalar_lea.sflag [#allocation4], 1
    %1613 = vsyncpa %s1612, 1

</llo_original>
